<compile_context>
chip_gen: v7x
topology: tpu7x:2x2x1
jax: 0.10.0
libtpu: 0.0.40
codegen_flags: <defaults>
</compile_context>

<pallas_src>
import functools

import jax
import jax.numpy as jnp
import numpy as np
from jax.experimental import pallas as pl
from jax.experimental.pallas import tpu as pltpu

BN_EPS = 1e-5

# Layer slot order in the packed weight tensor (slot 4 = fused fc21|fc22 head).
_W_SLOTS = ["linear1", "linear2", "linear3", "fc1", None,
            "fc3", "fc4", "linear4", "linear5", "linear6"]
# BatchNorm order; gamma/beta of BN k live at v_pack rows 10+2k / 11+2k.
_BN_ORDER = ["lin_bn1", "lin_bn2", "lin_bn3", "bn1", "fc_bn3", "fc_bn4",
             "lin_bn4", "lin_bn5", "lin_bn6"]
_NUM_W = len(_W_SLOTS)                    # 10
_NUM_V = _NUM_W + 2 * len(_BN_ORDER)      # 28


def autoencoder_kernel(x_ref, eps_ref, w_hbm, v_ref, out_ref, w_vmem, w_sem, *, lat):
    """Single-block forward. All activations are (N, P) f32, features on the
    lane axis; padded lanes are carried as exact zeros end-to-end.  Weights are
    streamed slot-by-slot from HBM into bf16 VMEM scratch."""
    N, P = x_ref.shape

    # Fire every per-slot weight DMA up front; each matmul only waits on its own
    # slot, so the bulk of the weight traffic overlaps the BN/matmul chain.
    for s in range(_NUM_W):
        pltpu.make_async_copy(w_hbm.at[s], w_vmem.at[s], w_sem.at[s]).start()

    def vrow(i):                          # (1, P) bias / gamma / beta row (f32)
        return v_ref[i:i + 1, :]

    def linear(h, slot):                  # y = h @ W + b (padded lanes stay 0)
        pltpu.make_async_copy(w_hbm.at[slot], w_vmem.at[slot], w_sem.at[slot]).wait()
        return jnp.dot(h.astype(jnp.bfloat16), w_vmem[slot],
                       preferred_element_type=jnp.float32) + vrow(slot)

    def bn(h, k):                         # training-mode BatchNorm1d, affine folded
        gamma = vrow(_NUM_W + 2 * k)
        beta = vrow(_NUM_W + 2 * k + 1)
        # Two independent cross-sublane reductions (dual-issue on the XLU);
        # clamp guards the E[h^2]-E[h]^2 cancellation against tiny negatives.
        mean = jnp.mean(h, axis=0, keepdims=True)
        meansq = jnp.mean(h * h, axis=0, keepdims=True)
        var = jnp.maximum(meansq - mean * mean, 0.0)
        scale = gamma * jax.lax.rsqrt(var + BN_EPS)      # rsqrt -> EUP slot
        return (h - mean) * scale + beta

    def relu(h):
        return jnp.maximum(h, 0.0)

    # ---------------- encode ----------------
    h = relu(bn(linear(x_ref[...], 0), 0))      # linear1 + lin_bn1
    h = relu(bn(linear(h, 1), 1))               # linear2 + lin_bn2
    h = relu(bn(linear(h, 2), 2))               # linear3 + lin_bn3
    h = relu(bn(linear(h, 3), 3))               # fc1     + bn1
    head = linear(h, 4)                         # fused fc21|fc22 head:
                                                # lanes [0:lat)=mu, [lat:2lat)=logvar, else 0

    # ------------- reparameterize (training mode), no lane roll -------------
    # eps_ref holds eps in lanes [lat:2*lat) and zeros elsewhere, so
    # z_wide = [ mu | eps*std | 0... ]; the "+ eps*std" fold happens inside the
    # fc3 matmul because slot 5's weight rows are duplicated at [lat:2*lat).
    lane = jax.lax.broadcasted_iota(jnp.int32, (N, P), 1)
    mu_part = jnp.where(lane < lat, head, 0.0)
    z_wide = mu_part + eps_ref[...] * jnp.exp(0.5 * head)

    # ---------------- decode ----------------
    h = relu(bn(linear(z_wide, 5), 4))          # fc3 (dup rows) + fc_bn3
    h = relu(bn(linear(h, 6), 5))               # fc4     + fc_bn4
    h = relu(bn(linear(h, 7), 6))               # linear4 + lin_bn4
    h = relu(bn(linear(h, 8), 7))               # linear5 + lin_bn5
    recon = bn(linear(h, 9), 8)                 # linear6 + lin_bn6 (no relu)

    # single lane-dense (N, 2P) output slab [recon | raw head]; both stores are
    # 128-lane aligned -> unmasked vst, one writeback DMA
    out_ref[:, 0:P] = recon
    out_ref[:, P:2 * P] = head


def _layer_dims(D_in, H, H2, LAT):
    lin = {"linear1": (D_in, H), "linear2": (H, H2), "linear3": (H2, H2),
           "fc1": (H2, LAT), "fc21": (LAT, LAT), "fc22": (LAT, LAT),
           "fc3": (LAT, LAT), "fc4": (LAT, H2), "linear4": (H2, H2),
           "linear5": (H2, H), "linear6": (H, D_in)}
    bn = {"lin_bn1": H, "lin_bn2": H2, "lin_bn3": H2, "bn1": LAT,
          "fc_bn3": LAT, "fc_bn4": H2, "lin_bn4": H2, "lin_bn5": H,
          "lin_bn6": D_in}
    return lin, bn


def init_params(key, D_in, H=50, H2=12, latent_dim=3):
    """PyTorch-layout params: Linear weight (out,in) / bias (out,); BN gamma/beta (d,)."""
    lin, bn = _layer_dims(D_in, H, H2, latent_dim)
    params = {}
    for i, (name, (din, dout)) in enumerate(lin.items()):
        kw, kb = jax.random.split(jax.random.fold_in(key, i))
        bound = 1.0 / (din ** 0.5)
        params[name + "_w"] = jax.random.uniform(kw, (dout, din), jnp.float32, -bound, bound)
        params[name + "_b"] = jax.random.uniform(kb, (dout,), jnp.float32, -bound, bound)
    for i, (name, d) in enumerate(bn.items()):
        kg, kb = jax.random.split(jax.random.fold_in(key, 100 + i))
        params[name + "_g"] = 1.0 + 0.1 * jax.random.normal(kg, (d,), jnp.float32)
        params[name + "_be"] = 0.1 * jax.random.normal(kb, (d,), jnp.float32)
    return params


def pack_params(params, D_in, H=50, H2=12, latent_dim=3, pad=128):
    """Pack all weights into a bf16 (10, P, P) tensor (transposed to (in,out),
    zero-padded) and all biases / BN gamma / BN beta into an f32 (28, P)."""
    lin, _ = _layer_dims(D_in, H, H2, latent_dim)
    P = pad
    LAT = latent_dim
    w_pack = jnp.zeros((_NUM_W, P, P), jnp.bfloat16)
    v_pack = jnp.zeros((_NUM_V, P), jnp.float32)
    for slot, name in enumerate(_W_SLOTS):
        if name is None:                     # fused head slot, filled below
            continue
        din, dout = lin[name]
        w_pack = w_pack.at[slot, :din, :dout].set(params[name + "_w"].T.astype(jnp.bfloat16))
        v_pack = v_pack.at[slot, :dout].set(params[name + "_b"])
    # fused fc21|fc22 head at slot 4: output lanes [0:LAT)=mu, [LAT:2*LAT)=logvar
    w_pack = w_pack.at[4, :LAT, :LAT].set(params["fc21_w"].T.astype(jnp.bfloat16))
    w_pack = w_pack.at[4, :LAT, LAT:2 * LAT].set(params["fc22_w"].T.astype(jnp.bfloat16))
    v_pack = v_pack.at[4, :LAT].set(params["fc21_b"])
    v_pack = v_pack.at[4, LAT:2 * LAT].set(params["fc22_b"])
    # fc3 (slot 5): duplicate its weight rows at [LAT:2*LAT) so the kernel can
    # feed the un-rolled [mu | eps*std] slab straight into fc3 (the
    # z = mu + eps*std add is absorbed by the matmul).  Rows >= 2*LAT stay 0,
    # preserving the padded-lanes-stay-zero invariant.
    w_pack = w_pack.at[5, LAT:2 * LAT, :LAT].set(params["fc3_w"].T.astype(jnp.bfloat16))
    for k, name in enumerate(_BN_ORDER):
        d = params[name + "_g"].shape[0]
        v_pack = v_pack.at[_NUM_W + 2 * k, :d].set(params[name + "_g"])
        v_pack = v_pack.at[_NUM_W + 2 * k + 1, :d].set(params[name + "_be"])
    return w_pack, v_pack


def autoencoder_forward(x, eps, params, H=50, H2=12, latent_dim=3):
    N, D_in = x.shape
    max_dim = max(D_in, H, H2, 2 * latent_dim)
    P = 128 * ((max_dim + 127) // 128)       # common lane-padded feature width

    w_pack, v_pack = pack_params(params, D_in, H, H2, latent_dim, pad=P)
    x_pad = jnp.zeros((N, P), jnp.float32).at[:, :D_in].set(x)
    # eps is pre-shifted to lanes [LAT, 2*LAT): the kernel forms z directly from
    # the raw fused head without an XLU lane roll.
    eps_pad = jnp.zeros((N, P), jnp.float32).at[:, latent_dim:2 * latent_dim].set(eps)

    # TODO(synk): BatchNorm1d running_mean/running_var buffer updates (stateful
    # training-side bookkeeping) are not reproduced; forward outputs don't use them.
    vmem = pl.BlockSpec(memory_space=pltpu.MemorySpace.VMEM)
    out = pl.pallas_call(
        functools.partial(autoencoder_kernel, lat=latent_dim),
        out_shape=jax.ShapeDtypeStruct((N, 2 * P), jnp.float32),
        in_specs=[vmem,                                   # x_pad
                  vmem,                                   # eps_pad
                  pl.BlockSpec(memory_space=pl.ANY),      # w_pack stays in HBM; streamed
                  vmem],                                  # v_pack
        out_specs=vmem,
        scratch_shapes=[pltpu.VMEM((_NUM_W, P, P), jnp.bfloat16),   # streamed weight slots
                        pltpu.SemaphoreType.DMA((_NUM_W,))],
    )(x_pad, eps_pad, w_pack, v_pack)

    recon = out[:, :D_in]
    mu = out[:, P:P + latent_dim]
    logvar = out[:, P + latent_dim:P + 2 * latent_dim]
    return recon, mu, logvar


def reference_forward(x, eps, params):
    """Pure-JAX f32 reference (unpacked PyTorch-layout params), same training-mode math."""
    hi = jax.lax.Precision.HIGHEST

    def linear(h, name):
        return jnp.dot(h, params[name + "_w"].T, precision=hi) + params[name + "_b"]

    def bn(h, name):
        mean = jnp.mean(h, axis=0, keepdims=True)
        var = jnp.mean((h - mean) ** 2, axis=0, keepdims=True)
        xhat = (h - mean) * jax.lax.rsqrt(var + BN_EPS)
        return xhat * params[name + "_g"] + params[name + "_be"]

    relu = lambda v: jnp.maximum(v, 0.0)
    h = relu(bn(linear(x, "linear1"), "lin_bn1"))
    h = relu(bn(linear(h, "linear2"), "lin_bn2"))
    h = relu(bn(linear(h, "linear3"), "lin_bn3"))
    h = relu(bn(linear(h, "fc1"), "bn1"))
    mu = linear(h, "fc21")
    logvar = linear(h, "fc22")
    z = eps * jnp.exp(0.5 * logvar) + mu
    h = relu(bn(linear(z, "fc3"), "fc_bn3"))
    h = relu(bn(linear(h, "fc4"), "fc_bn4"))
    h = relu(bn(linear(h, "linear4"), "lin_bn4"))
    h = relu(bn(linear(h, "linear5"), "lin_bn5"))
    recon = bn(linear(h, "linear6"), "lin_bn6")
    return recon, mu, logvar


if __name__ == "__main__":
    # Small shapes consistent with the module defaults.
    N, D_in, H, H2, LAT = 8, 16, 50, 12, 3

    key = jax.random.PRNGKey(0)
    kx, keps, kp = jax.random.split(key, 3)

    x = jax.random.normal(kx, (N, D_in), jnp.float32)
    eps = jax.random.normal(keps, (N, LAT), jnp.float32)   # reparameterization noise
    params = init_params(kp, D_in, H=H, H2=H2, latent_dim=LAT)

    recon, mu, logvar = autoencoder_forward(x, eps, params, H=H, H2=H2, latent_dim=LAT)
    jax.block_until_ready((recon, mu, logvar))

    assert recon.shape == (N, D_in)
    assert mu.shape == (N, LAT)
    assert logvar.shape == (N, LAT)

    # Kernel uses bf16 weights/operands on the MXU (f32 accumulation), so compare
    # against the f32 reference with a correspondingly widened tolerance.
    r_recon, r_mu, r_logvar = reference_forward(x, eps, params)
    np.testing.assert_allclose(np.asarray(mu), np.asarray(r_mu), rtol=1e-1, atol=5e-2)
    np.testing.assert_allclose(np.asarray(logvar), np.asarray(r_logvar), rtol=1e-1, atol=5e-2)
    np.testing.assert_allclose(np.asarray(recon), np.asarray(r_recon), rtol=1e-1, atol=1e-1)

    print("KERNEL_OK")
</pallas_src>

<mosaic_0001>
module attributes {stable_mosaic.version = 11 : i64} {
  func.func @autoencoder_kernel(%arg0: memref<8x128xf32, #tpu.memory_space<vmem>>, %arg1: memref<8x128xf32, #tpu.memory_space<vmem>>, %arg2: memref<10x128x128xbf16, #tpu.memory_space<any>>, %arg3: memref<28x128xf32, #tpu.memory_space<vmem>>, %arg4: memref<8x256xf32, #tpu.memory_space<vmem>>, %arg5: memref<10x128x128xbf16, #tpu.memory_space<vmem>>, %arg6: memref<10x!tpu.dma_semaphore, #tpu.memory_space<semaphore_mem>>) attributes {dimension_semantics = [], scalar_prefetch = 0 : i64, scratch_operands = 2 : i64, tpu.core_type = #tpu.core_type<tc>} {
    %c0_i32 = arith.constant 0 : i32
    %c0_i32_0 = arith.constant 0 : i32
    %c0_i32_1 = arith.constant 0 : i32
    %c0_i32_2 = arith.constant 0 : i32
    %c0_i32_3 = arith.constant 0 : i32
    %0 = tpu.memref_slice %arg2[%c0_i32, %c0_i32_2, %c0_i32_3] : memref<10x128x128xbf16, #tpu.memory_space<any>> -> memref<1x128x128xbf16, #tpu.memory_space<any>>
    %1 = tpu.memref_squeeze %0 : memref<1x128x128xbf16, #tpu.memory_space<any>> -> memref<128x128xbf16, #tpu.memory_space<any>>
    %c0_i32_4 = arith.constant 0 : i32
    %c0_i32_5 = arith.constant 0 : i32
    %2 = tpu.memref_slice %arg5[%c0_i32_0, %c0_i32_4, %c0_i32_5] : memref<10x128x128xbf16, #tpu.memory_space<vmem>> -> memref<1x128x128xbf16, #tpu.memory_space<vmem>>
    %3 = tpu.memref_squeeze %2 : memref<1x128x128xbf16, #tpu.memory_space<vmem>> -> memref<128x128xbf16, #tpu.memory_space<vmem>>
    %4 = tpu.memref_slice %arg6[%c0_i32_1] : memref<10x!tpu.dma_semaphore, #tpu.memory_space<semaphore_mem>> -> memref<1x!tpu.dma_semaphore, #tpu.memory_space<semaphore_mem>>
    %5 = tpu.memref_squeeze %4 : memref<1x!tpu.dma_semaphore, #tpu.memory_space<semaphore_mem>> -> memref<!tpu.dma_semaphore, #tpu.memory_space<semaphore_mem>>
    tpu.enqueue_dma source(%1 : memref<128x128xbf16, #tpu.memory_space<any>>) target(%3 : memref<128x128xbf16, #tpu.memory_space<vmem>>) target_semaphore(%5 : memref<!tpu.dma_semaphore, #tpu.memory_space<semaphore_mem>>)
    %c1_i32 = arith.constant 1 : i32
    %c1_i32_6 = arith.constant 1 : i32
    %c1_i32_7 = arith.constant 1 : i32
    %c0_i32_8 = arith.constant 0 : i32
    %c0_i32_9 = arith.constant 0 : i32
    %6 = tpu.memref_slice %arg2[%c1_i32, %c0_i32_8, %c0_i32_9] : memref<10x128x128xbf16, #tpu.memory_space<any>> -> memref<1x128x128xbf16, #tpu.memory_space<any>>
    %7 = tpu.memref_squeeze %6 : memref<1x128x128xbf16, #tpu.memory_space<any>> -> memref<128x128xbf16, #tpu.memory_space<any>>
    %c0_i32_10 = arith.constant 0 : i32
    %c0_i32_11 = arith.constant 0 : i32
    %8 = tpu.memref_slice %arg5[%c1_i32_6, %c0_i32_10, %c0_i32_11] : memref<10x128x128xbf16, #tpu.memory_space<vmem>> -> memref<1x128x128xbf16, #tpu.memory_space<vmem>>
    %9 = tpu.memref_squeeze %8 : memref<1x128x128xbf16, #tpu.memory_space<vmem>> -> memref<128x128xbf16, #tpu.memory_space<vmem>>
    %10 = tpu.memref_slice %arg6[%c1_i32_7] : memref<10x!tpu.dma_semaphore, #tpu.memory_space<semaphore_mem>> -> memref<1x!tpu.dma_semaphore, #tpu.memory_space<semaphore_mem>>
    %11 = tpu.memref_squeeze %10 : memref<1x!tpu.dma_semaphore, #tpu.memory_space<semaphore_mem>> -> memref<!tpu.dma_semaphore, #tpu.memory_space<semaphore_mem>>
    tpu.enqueue_dma source(%7 : memref<128x128xbf16, #tpu.memory_space<any>>) target(%9 : memref<128x128xbf16, #tpu.memory_space<vmem>>) target_semaphore(%11 : memref<!tpu.dma_semaphore, #tpu.memory_space<semaphore_mem>>)
    %c2_i32 = arith.constant 2 : i32
    %c2_i32_12 = arith.constant 2 : i32
    %c2_i32_13 = arith.constant 2 : i32
    %c0_i32_14 = arith.constant 0 : i32
    %c0_i32_15 = arith.constant 0 : i32
    %12 = tpu.memref_slice %arg2[%c2_i32, %c0_i32_14, %c0_i32_15] : memref<10x128x128xbf16, #tpu.memory_space<any>> -> memref<1x128x128xbf16, #tpu.memory_space<any>>
    %13 = tpu.memref_squeeze %12 : memref<1x128x128xbf16, #tpu.memory_space<any>> -> memref<128x128xbf16, #tpu.memory_space<any>>
    %c0_i32_16 = arith.constant 0 : i32
    %c0_i32_17 = arith.constant 0 : i32
    %14 = tpu.memref_slice %arg5[%c2_i32_12, %c0_i32_16, %c0_i32_17] : memref<10x128x128xbf16, #tpu.memory_space<vmem>> -> memref<1x128x128xbf16, #tpu.memory_space<vmem>>
    %15 = tpu.memref_squeeze %14 : memref<1x128x128xbf16, #tpu.memory_space<vmem>> -> memref<128x128xbf16, #tpu.memory_space<vmem>>
    %16 = tpu.memref_slice %arg6[%c2_i32_13] : memref<10x!tpu.dma_semaphore, #tpu.memory_space<semaphore_mem>> -> memref<1x!tpu.dma_semaphore, #tpu.memory_space<semaphore_mem>>
    %17 = tpu.memref_squeeze %16 : memref<1x!tpu.dma_semaphore, #tpu.memory_space<semaphore_mem>> -> memref<!tpu.dma_semaphore, #tpu.memory_space<semaphore_mem>>
    tpu.enqueue_dma source(%13 : memref<128x128xbf16, #tpu.memory_space<any>>) target(%15 : memref<128x128xbf16, #tpu.memory_space<vmem>>) target_semaphore(%17 : memref<!tpu.dma_semaphore, #tpu.memory_space<semaphore_mem>>)
    %c3_i32 = arith.constant 3 : i32
    %c3_i32_18 = arith.constant 3 : i32
    %c3_i32_19 = arith.constant 3 : i32
    %c0_i32_20 = arith.constant 0 : i32
    %c0_i32_21 = arith.constant 0 : i32
    %18 = tpu.memref_slice %arg2[%c3_i32, %c0_i32_20, %c0_i32_21] : memref<10x128x128xbf16, #tpu.memory_space<any>> -> memref<1x128x128xbf16, #tpu.memory_space<any>>
    %19 = tpu.memref_squeeze %18 : memref<1x128x128xbf16, #tpu.memory_space<any>> -> memref<128x128xbf16, #tpu.memory_space<any>>
    %c0_i32_22 = arith.constant 0 : i32
    %c0_i32_23 = arith.constant 0 : i32
    %20 = tpu.memref_slice %arg5[%c3_i32_18, %c0_i32_22, %c0_i32_23] : memref<10x128x128xbf16, #tpu.memory_space<vmem>> -> memref<1x128x128xbf16, #tpu.memory_space<vmem>>
    %21 = tpu.memref_squeeze %20 : memref<1x128x128xbf16, #tpu.memory_space<vmem>> -> memref<128x128xbf16, #tpu.memory_space<vmem>>
    %22 = tpu.memref_slice %arg6[%c3_i32_19] : memref<10x!tpu.dma_semaphore, #tpu.memory_space<semaphore_mem>> -> memref<1x!tpu.dma_semaphore, #tpu.memory_space<semaphore_mem>>
    %23 = tpu.memref_squeeze %22 : memref<1x!tpu.dma_semaphore, #tpu.memory_space<semaphore_mem>> -> memref<!tpu.dma_semaphore, #tpu.memory_space<semaphore_mem>>
    tpu.enqueue_dma source(%19 : memref<128x128xbf16, #tpu.memory_space<any>>) target(%21 : memref<128x128xbf16, #tpu.memory_space<vmem>>) target_semaphore(%23 : memref<!tpu.dma_semaphore, #tpu.memory_space<semaphore_mem>>)
    %c4_i32 = arith.constant 4 : i32
    %c4_i32_24 = arith.constant 4 : i32
    %c4_i32_25 = arith.constant 4 : i32
    %c0_i32_26 = arith.constant 0 : i32
    %c0_i32_27 = arith.constant 0 : i32
    %24 = tpu.memref_slice %arg2[%c4_i32, %c0_i32_26, %c0_i32_27] : memref<10x128x128xbf16, #tpu.memory_space<any>> -> memref<1x128x128xbf16, #tpu.memory_space<any>>
    %25 = tpu.memref_squeeze %24 : memref<1x128x128xbf16, #tpu.memory_space<any>> -> memref<128x128xbf16, #tpu.memory_space<any>>
    %c0_i32_28 = arith.constant 0 : i32
    %c0_i32_29 = arith.constant 0 : i32
    %26 = tpu.memref_slice %arg5[%c4_i32_24, %c0_i32_28, %c0_i32_29] : memref<10x128x128xbf16, #tpu.memory_space<vmem>> -> memref<1x128x128xbf16, #tpu.memory_space<vmem>>
    %27 = tpu.memref_squeeze %26 : memref<1x128x128xbf16, #tpu.memory_space<vmem>> -> memref<128x128xbf16, #tpu.memory_space<vmem>>
    %28 = tpu.memref_slice %arg6[%c4_i32_25] : memref<10x!tpu.dma_semaphore, #tpu.memory_space<semaphore_mem>> -> memref<1x!tpu.dma_semaphore, #tpu.memory_space<semaphore_mem>>
    %29 = tpu.memref_squeeze %28 : memref<1x!tpu.dma_semaphore, #tpu.memory_space<semaphore_mem>> -> memref<!tpu.dma_semaphore, #tpu.memory_space<semaphore_mem>>
    tpu.enqueue_dma source(%25 : memref<128x128xbf16, #tpu.memory_space<any>>) target(%27 : memref<128x128xbf16, #tpu.memory_space<vmem>>) target_semaphore(%29 : memref<!tpu.dma_semaphore, #tpu.memory_space<semaphore_mem>>)
    %c5_i32 = arith.constant 5 : i32
    %c5_i32_30 = arith.constant 5 : i32
    %c5_i32_31 = arith.constant 5 : i32
    %c0_i32_32 = arith.constant 0 : i32
    %c0_i32_33 = arith.constant 0 : i32
    %30 = tpu.memref_slice %arg2[%c5_i32, %c0_i32_32, %c0_i32_33] : memref<10x128x128xbf16, #tpu.memory_space<any>> -> memref<1x128x128xbf16, #tpu.memory_space<any>>
    %31 = tpu.memref_squeeze %30 : memref<1x128x128xbf16, #tpu.memory_space<any>> -> memref<128x128xbf16, #tpu.memory_space<any>>
    %c0_i32_34 = arith.constant 0 : i32
    %c0_i32_35 = arith.constant 0 : i32
    %32 = tpu.memref_slice %arg5[%c5_i32_30, %c0_i32_34, %c0_i32_35] : memref<10x128x128xbf16, #tpu.memory_space<vmem>> -> memref<1x128x128xbf16, #tpu.memory_space<vmem>>
    %33 = tpu.memref_squeeze %32 : memref<1x128x128xbf16, #tpu.memory_space<vmem>> -> memref<128x128xbf16, #tpu.memory_space<vmem>>
    %34 = tpu.memref_slice %arg6[%c5_i32_31] : memref<10x!tpu.dma_semaphore, #tpu.memory_space<semaphore_mem>> -> memref<1x!tpu.dma_semaphore, #tpu.memory_space<semaphore_mem>>
    %35 = tpu.memref_squeeze %34 : memref<1x!tpu.dma_semaphore, #tpu.memory_space<semaphore_mem>> -> memref<!tpu.dma_semaphore, #tpu.memory_space<semaphore_mem>>
    tpu.enqueue_dma source(%31 : memref<128x128xbf16, #tpu.memory_space<any>>) target(%33 : memref<128x128xbf16, #tpu.memory_space<vmem>>) target_semaphore(%35 : memref<!tpu.dma_semaphore, #tpu.memory_space<semaphore_mem>>)
    %c6_i32 = arith.constant 6 : i32
    %c6_i32_36 = arith.constant 6 : i32
    %c6_i32_37 = arith.constant 6 : i32
    %c0_i32_38 = arith.constant 0 : i32
    %c0_i32_39 = arith.constant 0 : i32
    %36 = tpu.memref_slice %arg2[%c6_i32, %c0_i32_38, %c0_i32_39] : memref<10x128x128xbf16, #tpu.memory_space<any>> -> memref<1x128x128xbf16, #tpu.memory_space<any>>
    %37 = tpu.memref_squeeze %36 : memref<1x128x128xbf16, #tpu.memory_space<any>> -> memref<128x128xbf16, #tpu.memory_space<any>>
    %c0_i32_40 = arith.constant 0 : i32
    %c0_i32_41 = arith.constant 0 : i32
    %38 = tpu.memref_slice %arg5[%c6_i32_36, %c0_i32_40, %c0_i32_41] : memref<10x128x128xbf16, #tpu.memory_space<vmem>> -> memref<1x128x128xbf16, #tpu.memory_space<vmem>>
    %39 = tpu.memref_squeeze %38 : memref<1x128x128xbf16, #tpu.memory_space<vmem>> -> memref<128x128xbf16, #tpu.memory_space<vmem>>
    %40 = tpu.memref_slice %arg6[%c6_i32_37] : memref<10x!tpu.dma_semaphore, #tpu.memory_space<semaphore_mem>> -> memref<1x!tpu.dma_semaphore, #tpu.memory_space<semaphore_mem>>
    %41 = tpu.memref_squeeze %40 : memref<1x!tpu.dma_semaphore, #tpu.memory_space<semaphore_mem>> -> memref<!tpu.dma_semaphore, #tpu.memory_space<semaphore_mem>>
    tpu.enqueue_dma source(%37 : memref<128x128xbf16, #tpu.memory_space<any>>) target(%39 : memref<128x128xbf16, #tpu.memory_space<vmem>>) target_semaphore(%41 : memref<!tpu.dma_semaphore, #tpu.memory_space<semaphore_mem>>)
    %c7_i32 = arith.constant 7 : i32
    %c7_i32_42 = arith.constant 7 : i32
    %c7_i32_43 = arith.constant 7 : i32
    %c0_i32_44 = arith.constant 0 : i32
    %c0_i32_45 = arith.constant 0 : i32
    %42 = tpu.memref_slice %arg2[%c7_i32, %c0_i32_44, %c0_i32_45] : memref<10x128x128xbf16, #tpu.memory_space<any>> -> memref<1x128x128xbf16, #tpu.memory_space<any>>
    %43 = tpu.memref_squeeze %42 : memref<1x128x128xbf16, #tpu.memory_space<any>> -> memref<128x128xbf16, #tpu.memory_space<any>>
    %c0_i32_46 = arith.constant 0 : i32
    %c0_i32_47 = arith.constant 0 : i32
    %44 = tpu.memref_slice %arg5[%c7_i32_42, %c0_i32_46, %c0_i32_47] : memref<10x128x128xbf16, #tpu.memory_space<vmem>> -> memref<1x128x128xbf16, #tpu.memory_space<vmem>>
    %45 = tpu.memref_squeeze %44 : memref<1x128x128xbf16, #tpu.memory_space<vmem>> -> memref<128x128xbf16, #tpu.memory_space<vmem>>
    %46 = tpu.memref_slice %arg6[%c7_i32_43] : memref<10x!tpu.dma_semaphore, #tpu.memory_space<semaphore_mem>> -> memref<1x!tpu.dma_semaphore, #tpu.memory_space<semaphore_mem>>
    %47 = tpu.memref_squeeze %46 : memref<1x!tpu.dma_semaphore, #tpu.memory_space<semaphore_mem>> -> memref<!tpu.dma_semaphore, #tpu.memory_space<semaphore_mem>>
    tpu.enqueue_dma source(%43 : memref<128x128xbf16, #tpu.memory_space<any>>) target(%45 : memref<128x128xbf16, #tpu.memory_space<vmem>>) target_semaphore(%47 : memref<!tpu.dma_semaphore, #tpu.memory_space<semaphore_mem>>)
    %c8_i32 = arith.constant 8 : i32
    %c8_i32_48 = arith.constant 8 : i32
    %c8_i32_49 = arith.constant 8 : i32
    %c0_i32_50 = arith.constant 0 : i32
    %c0_i32_51 = arith.constant 0 : i32
    %48 = tpu.memref_slice %arg2[%c8_i32, %c0_i32_50, %c0_i32_51] : memref<10x128x128xbf16, #tpu.memory_space<any>> -> memref<1x128x128xbf16, #tpu.memory_space<any>>
    %49 = tpu.memref_squeeze %48 : memref<1x128x128xbf16, #tpu.memory_space<any>> -> memref<128x128xbf16, #tpu.memory_space<any>>
    %c0_i32_52 = arith.constant 0 : i32
    %c0_i32_53 = arith.constant 0 : i32
    %50 = tpu.memref_slice %arg5[%c8_i32_48, %c0_i32_52, %c0_i32_53] : memref<10x128x128xbf16, #tpu.memory_space<vmem>> -> memref<1x128x128xbf16, #tpu.memory_space<vmem>>
    %51 = tpu.memref_squeeze %50 : memref<1x128x128xbf16, #tpu.memory_space<vmem>> -> memref<128x128xbf16, #tpu.memory_space<vmem>>
    %52 = tpu.memref_slice %arg6[%c8_i32_49] : memref<10x!tpu.dma_semaphore, #tpu.memory_space<semaphore_mem>> -> memref<1x!tpu.dma_semaphore, #tpu.memory_space<semaphore_mem>>
    %53 = tpu.memref_squeeze %52 : memref<1x!tpu.dma_semaphore, #tpu.memory_space<semaphore_mem>> -> memref<!tpu.dma_semaphore, #tpu.memory_space<semaphore_mem>>
    tpu.enqueue_dma source(%49 : memref<128x128xbf16, #tpu.memory_space<any>>) target(%51 : memref<128x128xbf16, #tpu.memory_space<vmem>>) target_semaphore(%53 : memref<!tpu.dma_semaphore, #tpu.memory_space<semaphore_mem>>)
    %c9_i32 = arith.constant 9 : i32
    %c9_i32_54 = arith.constant 9 : i32
    %c9_i32_55 = arith.constant 9 : i32
    %c0_i32_56 = arith.constant 0 : i32
    %c0_i32_57 = arith.constant 0 : i32
    %54 = tpu.memref_slice %arg2[%c9_i32, %c0_i32_56, %c0_i32_57] : memref<10x128x128xbf16, #tpu.memory_space<any>> -> memref<1x128x128xbf16, #tpu.memory_space<any>>
    %55 = tpu.memref_squeeze %54 : memref<1x128x128xbf16, #tpu.memory_space<any>> -> memref<128x128xbf16, #tpu.memory_space<any>>
    %c0_i32_58 = arith.constant 0 : i32
    %c0_i32_59 = arith.constant 0 : i32
    %56 = tpu.memref_slice %arg5[%c9_i32_54, %c0_i32_58, %c0_i32_59] : memref<10x128x128xbf16, #tpu.memory_space<vmem>> -> memref<1x128x128xbf16, #tpu.memory_space<vmem>>
    %57 = tpu.memref_squeeze %56 : memref<1x128x128xbf16, #tpu.memory_space<vmem>> -> memref<128x128xbf16, #tpu.memory_space<vmem>>
    %58 = tpu.memref_slice %arg6[%c9_i32_55] : memref<10x!tpu.dma_semaphore, #tpu.memory_space<semaphore_mem>> -> memref<1x!tpu.dma_semaphore, #tpu.memory_space<semaphore_mem>>
    %59 = tpu.memref_squeeze %58 : memref<1x!tpu.dma_semaphore, #tpu.memory_space<semaphore_mem>> -> memref<!tpu.dma_semaphore, #tpu.memory_space<semaphore_mem>>
    tpu.enqueue_dma source(%55 : memref<128x128xbf16, #tpu.memory_space<any>>) target(%57 : memref<128x128xbf16, #tpu.memory_space<vmem>>) target_semaphore(%59 : memref<!tpu.dma_semaphore, #tpu.memory_space<semaphore_mem>>)
    %c0 = arith.constant 0 : index
    %c0_60 = arith.constant 0 : index
    %60 = vector.load %arg0[%c0, %c0_60] : memref<8x128xf32, #tpu.memory_space<vmem>>, vector<8x128xf32>
    %c0_i32_61 = arith.constant 0 : i32
    %c0_i32_62 = arith.constant 0 : i32
    %c0_i32_63 = arith.constant 0 : i32
    %c0_i32_64 = arith.constant 0 : i32
    %c0_i32_65 = arith.constant 0 : i32
    %61 = tpu.memref_slice %arg2[%c0_i32_61, %c0_i32_64, %c0_i32_65] : memref<10x128x128xbf16, #tpu.memory_space<any>> -> memref<1x128x128xbf16, #tpu.memory_space<any>>
    %62 = tpu.memref_squeeze %61 : memref<1x128x128xbf16, #tpu.memory_space<any>> -> memref<128x128xbf16, #tpu.memory_space<any>>
    %c0_i32_66 = arith.constant 0 : i32
    %c0_i32_67 = arith.constant 0 : i32
    %63 = tpu.memref_slice %arg5[%c0_i32_62, %c0_i32_66, %c0_i32_67] : memref<10x128x128xbf16, #tpu.memory_space<vmem>> -> memref<1x128x128xbf16, #tpu.memory_space<vmem>>
    %64 = tpu.memref_squeeze %63 : memref<1x128x128xbf16, #tpu.memory_space<vmem>> -> memref<128x128xbf16, #tpu.memory_space<vmem>>
    %65 = tpu.memref_slice %arg6[%c0_i32_63] : memref<10x!tpu.dma_semaphore, #tpu.memory_space<semaphore_mem>> -> memref<1x!tpu.dma_semaphore, #tpu.memory_space<semaphore_mem>>
    %66 = tpu.memref_squeeze %65 : memref<1x!tpu.dma_semaphore, #tpu.memory_space<semaphore_mem>> -> memref<!tpu.dma_semaphore, #tpu.memory_space<semaphore_mem>>
    tpu.wait_dma2 semaphore(%66 : memref<!tpu.dma_semaphore, #tpu.memory_space<semaphore_mem>>) src(%62 : memref<128x128xbf16, #tpu.memory_space<any>>) dst(%64 : memref<128x128xbf16, #tpu.memory_space<vmem>>)
    %67 = arith.truncf %60 : vector<8x128xf32> to vector<8x128xbf16>
    %c0_68 = arith.constant 0 : index
    %c0_69 = arith.constant 0 : index
    %c0_70 = arith.constant 0 : index
    %68 = vector.load %arg5[%c0_68, %c0_69, %c0_70] : memref<10x128x128xbf16, #tpu.memory_space<vmem>>, vector<1x128x128xbf16>
    %69 = vector.shape_cast %68 : vector<1x128x128xbf16> to vector<128x128xbf16>
    %cst = arith.constant dense<0.000000e+00> : vector<8x128xf32>
    %70 = tpu.matmul %67, %69, %cst {dimension_numbers = #tpu.dot_dimension_numbers<[1], [0], [0], [1], [0, 0, 1, 1], [], []>} : vector<8x128xbf16>, vector<128x128xbf16>, vector<8x128xf32> -> vector<8x128xf32>
    %c0_71 = arith.constant 0 : index
    %c0_72 = arith.constant 0 : index
    %71 = vector.load %arg3[%c0_71, %c0_72] : memref<28x128xf32, #tpu.memory_space<vmem>>, vector<1x128xf32>
    %72 = vector.broadcast %71 : vector<1x128xf32> to vector<8x128xf32>
    %73 = arith.addf %70, %72 : vector<8x128xf32>
    %c10 = arith.constant 10 : index
    %c0_73 = arith.constant 0 : index
    %74 = vector.load %arg3[%c10, %c0_73] : memref<28x128xf32, #tpu.memory_space<vmem>>, vector<1x128xf32>
    %c11 = arith.constant 11 : index
    %c0_74 = arith.constant 0 : index
    %75 = vector.load %arg3[%c11, %c0_74] : memref<28x128xf32, #tpu.memory_space<vmem>>, vector<1x128xf32>
    %cst_75 = arith.constant dense<0.000000e+00> : vector<128xf32>
    %76 = vector.multi_reduction <add>, %73, %cst_75 [0] : vector<8x128xf32> to vector<128xf32>
    %77 = vector.shape_cast %76 : vector<128xf32> to vector<1x128xf32>
    %cst_76 = arith.constant 8.000000e+00 : f32
    %78 = vector.broadcast %cst_76 : f32 to vector<1x128xf32>
    %79 = arith.divf %77, %78 : vector<1x128xf32>
    %80 = arith.mulf %73, %73 : vector<8x128xf32>
    %cst_77 = arith.constant dense<0.000000e+00> : vector<128xf32>
    %81 = vector.multi_reduction <add>, %80, %cst_77 [0] : vector<8x128xf32> to vector<128xf32>
    %82 = vector.shape_cast %81 : vector<128xf32> to vector<1x128xf32>
    %cst_78 = arith.constant 8.000000e+00 : f32
    %83 = vector.broadcast %cst_78 : f32 to vector<1x128xf32>
    %84 = arith.divf %82, %83 : vector<1x128xf32>
    %85 = arith.mulf %79, %79 : vector<1x128xf32>
    %86 = arith.subf %84, %85 : vector<1x128xf32>
    %cst_79 = arith.constant 0.000000e+00 : f32
    %87 = vector.broadcast %cst_79 : f32 to vector<1x128xf32>
    %88 = arith.maximumf %86, %87 : vector<1x128xf32>
    %cst_80 = arith.constant 9.99999974E-6 : f32
    %89 = vector.broadcast %cst_80 : f32 to vector<1x128xf32>
    %90 = arith.addf %88, %89 : vector<1x128xf32>
    %91 = math.rsqrt %90 : vector<1x128xf32>
    %92 = arith.mulf %74, %91 : vector<1x128xf32>
    %93 = vector.broadcast %79 : vector<1x128xf32> to vector<8x128xf32>
    %94 = arith.subf %73, %93 : vector<8x128xf32>
    %95 = vector.broadcast %92 : vector<1x128xf32> to vector<8x128xf32>
    %96 = arith.mulf %94, %95 : vector<8x128xf32>
    %97 = vector.broadcast %75 : vector<1x128xf32> to vector<8x128xf32>
    %98 = arith.addf %96, %97 : vector<8x128xf32>
    %cst_81 = arith.constant 0.000000e+00 : f32
    %99 = vector.broadcast %cst_81 : f32 to vector<8x128xf32>
    %100 = arith.maximumf %98, %99 : vector<8x128xf32>
    %c1_i32_82 = arith.constant 1 : i32
    %c1_i32_83 = arith.constant 1 : i32
    %c1_i32_84 = arith.constant 1 : i32
    %c0_i32_85 = arith.constant 0 : i32
    %c0_i32_86 = arith.constant 0 : i32
    %101 = tpu.memref_slice %arg2[%c1_i32_82, %c0_i32_85, %c0_i32_86] : memref<10x128x128xbf16, #tpu.memory_space<any>> -> memref<1x128x128xbf16, #tpu.memory_space<any>>
    %102 = tpu.memref_squeeze %101 : memref<1x128x128xbf16, #tpu.memory_space<any>> -> memref<128x128xbf16, #tpu.memory_space<any>>
    %c0_i32_87 = arith.constant 0 : i32
    %c0_i32_88 = arith.constant 0 : i32
    %103 = tpu.memref_slice %arg5[%c1_i32_83, %c0_i32_87, %c0_i32_88] : memref<10x128x128xbf16, #tpu.memory_space<vmem>> -> memref<1x128x128xbf16, #tpu.memory_space<vmem>>
    %104 = tpu.memref_squeeze %103 : memref<1x128x128xbf16, #tpu.memory_space<vmem>> -> memref<128x128xbf16, #tpu.memory_space<vmem>>
    %105 = tpu.memref_slice %arg6[%c1_i32_84] : memref<10x!tpu.dma_semaphore, #tpu.memory_space<semaphore_mem>> -> memref<1x!tpu.dma_semaphore, #tpu.memory_space<semaphore_mem>>
    %106 = tpu.memref_squeeze %105 : memref<1x!tpu.dma_semaphore, #tpu.memory_space<semaphore_mem>> -> memref<!tpu.dma_semaphore, #tpu.memory_space<semaphore_mem>>
    tpu.wait_dma2 semaphore(%106 : memref<!tpu.dma_semaphore, #tpu.memory_space<semaphore_mem>>) src(%102 : memref<128x128xbf16, #tpu.memory_space<any>>) dst(%104 : memref<128x128xbf16, #tpu.memory_space<vmem>>)
    %107 = arith.truncf %100 : vector<8x128xf32> to vector<8x128xbf16>
    %c1 = arith.constant 1 : index
    %c0_89 = arith.constant 0 : index
    %c0_90 = arith.constant 0 : index
    %108 = vector.load %arg5[%c1, %c0_89, %c0_90] : memref<10x128x128xbf16, #tpu.memory_space<vmem>>, vector<1x128x128xbf16>
    %109 = vector.shape_cast %108 : vector<1x128x128xbf16> to vector<128x128xbf16>
    %cst_91 = arith.constant dense<0.000000e+00> : vector<8x128xf32>
    %110 = tpu.matmul %107, %109, %cst_91 {dimension_numbers = #tpu.dot_dimension_numbers<[1], [0], [0], [1], [0, 0, 1, 1], [], []>} : vector<8x128xbf16>, vector<128x128xbf16>, vector<8x128xf32> -> vector<8x128xf32>
    %c1_92 = arith.constant 1 : index
    %c0_93 = arith.constant 0 : index
    %111 = vector.load %arg3[%c1_92, %c0_93] : memref<28x128xf32, #tpu.memory_space<vmem>>, vector<1x128xf32>
    %112 = vector.broadcast %111 : vector<1x128xf32> to vector<8x128xf32>
    %113 = arith.addf %110, %112 : vector<8x128xf32>
    %c12 = arith.constant 12 : index
    %c0_94 = arith.constant 0 : index
    %114 = vector.load %arg3[%c12, %c0_94] : memref<28x128xf32, #tpu.memory_space<vmem>>, vector<1x128xf32>
    %c13 = arith.constant 13 : index
    %c0_95 = arith.constant 0 : index
    %115 = vector.load %arg3[%c13, %c0_95] : memref<28x128xf32, #tpu.memory_space<vmem>>, vector<1x128xf32>
    %cst_96 = arith.constant dense<0.000000e+00> : vector<128xf32>
    %116 = vector.multi_reduction <add>, %113, %cst_96 [0] : vector<8x128xf32> to vector<128xf32>
    %117 = vector.shape_cast %116 : vector<128xf32> to vector<1x128xf32>
    %cst_97 = arith.constant 8.000000e+00 : f32
    %118 = vector.broadcast %cst_97 : f32 to vector<1x128xf32>
    %119 = arith.divf %117, %118 : vector<1x128xf32>
    %120 = arith.mulf %113, %113 : vector<8x128xf32>
    %cst_98 = arith.constant dense<0.000000e+00> : vector<128xf32>
    %121 = vector.multi_reduction <add>, %120, %cst_98 [0] : vector<8x128xf32> to vector<128xf32>
    %122 = vector.shape_cast %121 : vector<128xf32> to vector<1x128xf32>
    %cst_99 = arith.constant 8.000000e+00 : f32
    %123 = vector.broadcast %cst_99 : f32 to vector<1x128xf32>
    %124 = arith.divf %122, %123 : vector<1x128xf32>
    %125 = arith.mulf %119, %119 : vector<1x128xf32>
    %126 = arith.subf %124, %125 : vector<1x128xf32>
    %cst_100 = arith.constant 0.000000e+00 : f32
    %127 = vector.broadcast %cst_100 : f32 to vector<1x128xf32>
    %128 = arith.maximumf %126, %127 : vector<1x128xf32>
    %cst_101 = arith.constant 9.99999974E-6 : f32
    %129 = vector.broadcast %cst_101 : f32 to vector<1x128xf32>
    %130 = arith.addf %128, %129 : vector<1x128xf32>
    %131 = math.rsqrt %130 : vector<1x128xf32>
    %132 = arith.mulf %114, %131 : vector<1x128xf32>
    %133 = vector.broadcast %119 : vector<1x128xf32> to vector<8x128xf32>
    %134 = arith.subf %113, %133 : vector<8x128xf32>
    %135 = vector.broadcast %132 : vector<1x128xf32> to vector<8x128xf32>
    %136 = arith.mulf %134, %135 : vector<8x128xf32>
    %137 = vector.broadcast %115 : vector<1x128xf32> to vector<8x128xf32>
    %138 = arith.addf %136, %137 : vector<8x128xf32>
    %cst_102 = arith.constant 0.000000e+00 : f32
    %139 = vector.broadcast %cst_102 : f32 to vector<8x128xf32>
    %140 = arith.maximumf %138, %139 : vector<8x128xf32>
    %c2_i32_103 = arith.constant 2 : i32
    %c2_i32_104 = arith.constant 2 : i32
    %c2_i32_105 = arith.constant 2 : i32
    %c0_i32_106 = arith.constant 0 : i32
    %c0_i32_107 = arith.constant 0 : i32
    %141 = tpu.memref_slice %arg2[%c2_i32_103, %c0_i32_106, %c0_i32_107] : memref<10x128x128xbf16, #tpu.memory_space<any>> -> memref<1x128x128xbf16, #tpu.memory_space<any>>
    %142 = tpu.memref_squeeze %141 : memref<1x128x128xbf16, #tpu.memory_space<any>> -> memref<128x128xbf16, #tpu.memory_space<any>>
    %c0_i32_108 = arith.constant 0 : i32
    %c0_i32_109 = arith.constant 0 : i32
    %143 = tpu.memref_slice %arg5[%c2_i32_104, %c0_i32_108, %c0_i32_109] : memref<10x128x128xbf16, #tpu.memory_space<vmem>> -> memref<1x128x128xbf16, #tpu.memory_space<vmem>>
    %144 = tpu.memref_squeeze %143 : memref<1x128x128xbf16, #tpu.memory_space<vmem>> -> memref<128x128xbf16, #tpu.memory_space<vmem>>
    %145 = tpu.memref_slice %arg6[%c2_i32_105] : memref<10x!tpu.dma_semaphore, #tpu.memory_space<semaphore_mem>> -> memref<1x!tpu.dma_semaphore, #tpu.memory_space<semaphore_mem>>
    %146 = tpu.memref_squeeze %145 : memref<1x!tpu.dma_semaphore, #tpu.memory_space<semaphore_mem>> -> memref<!tpu.dma_semaphore, #tpu.memory_space<semaphore_mem>>
    tpu.wait_dma2 semaphore(%146 : memref<!tpu.dma_semaphore, #tpu.memory_space<semaphore_mem>>) src(%142 : memref<128x128xbf16, #tpu.memory_space<any>>) dst(%144 : memref<128x128xbf16, #tpu.memory_space<vmem>>)
    %147 = arith.truncf %140 : vector<8x128xf32> to vector<8x128xbf16>
    %c2 = arith.constant 2 : index
    %c0_110 = arith.constant 0 : index
    %c0_111 = arith.constant 0 : index
    %148 = vector.load %arg5[%c2, %c0_110, %c0_111] : memref<10x128x128xbf16, #tpu.memory_space<vmem>>, vector<1x128x128xbf16>
    %149 = vector.shape_cast %148 : vector<1x128x128xbf16> to vector<128x128xbf16>
    %cst_112 = arith.constant dense<0.000000e+00> : vector<8x128xf32>
    %150 = tpu.matmul %147, %149, %cst_112 {dimension_numbers = #tpu.dot_dimension_numbers<[1], [0], [0], [1], [0, 0, 1, 1], [], []>} : vector<8x128xbf16>, vector<128x128xbf16>, vector<8x128xf32> -> vector<8x128xf32>
    %c2_113 = arith.constant 2 : index
    %c0_114 = arith.constant 0 : index
    %151 = vector.load %arg3[%c2_113, %c0_114] : memref<28x128xf32, #tpu.memory_space<vmem>>, vector<1x128xf32>
    %152 = vector.broadcast %151 : vector<1x128xf32> to vector<8x128xf32>
    %153 = arith.addf %150, %152 : vector<8x128xf32>
    %c14 = arith.constant 14 : index
    %c0_115 = arith.constant 0 : index
    %154 = vector.load %arg3[%c14, %c0_115] : memref<28x128xf32, #tpu.memory_space<vmem>>, vector<1x128xf32>
    %c15 = arith.constant 15 : index
    %c0_116 = arith.constant 0 : index
    %155 = vector.load %arg3[%c15, %c0_116] : memref<28x128xf32, #tpu.memory_space<vmem>>, vector<1x128xf32>
    %cst_117 = arith.constant dense<0.000000e+00> : vector<128xf32>
    %156 = vector.multi_reduction <add>, %153, %cst_117 [0] : vector<8x128xf32> to vector<128xf32>
    %157 = vector.shape_cast %156 : vector<128xf32> to vector<1x128xf32>
    %cst_118 = arith.constant 8.000000e+00 : f32
    %158 = vector.broadcast %cst_118 : f32 to vector<1x128xf32>
    %159 = arith.divf %157, %158 : vector<1x128xf32>
    %160 = arith.mulf %153, %153 : vector<8x128xf32>
    %cst_119 = arith.constant dense<0.000000e+00> : vector<128xf32>
    %161 = vector.multi_reduction <add>, %160, %cst_119 [0] : vector<8x128xf32> to vector<128xf32>
    %162 = vector.shape_cast %161 : vector<128xf32> to vector<1x128xf32>
    %cst_120 = arith.constant 8.000000e+00 : f32
    %163 = vector.broadcast %cst_120 : f32 to vector<1x128xf32>
    %164 = arith.divf %162, %163 : vector<1x128xf32>
    %165 = arith.mulf %159, %159 : vector<1x128xf32>
    %166 = arith.subf %164, %165 : vector<1x128xf32>
    %cst_121 = arith.constant 0.000000e+00 : f32
    %167 = vector.broadcast %cst_121 : f32 to vector<1x128xf32>
    %168 = arith.maximumf %166, %167 : vector<1x128xf32>
    %cst_122 = arith.constant 9.99999974E-6 : f32
    %169 = vector.broadcast %cst_122 : f32 to vector<1x128xf32>
    %170 = arith.addf %168, %169 : vector<1x128xf32>
    %171 = math.rsqrt %170 : vector<1x128xf32>
    %172 = arith.mulf %154, %171 : vector<1x128xf32>
    %173 = vector.broadcast %159 : vector<1x128xf32> to vector<8x128xf32>
    %174 = arith.subf %153, %173 : vector<8x128xf32>
    %175 = vector.broadcast %172 : vector<1x128xf32> to vector<8x128xf32>
    %176 = arith.mulf %174, %175 : vector<8x128xf32>
    %177 = vector.broadcast %155 : vector<1x128xf32> to vector<8x128xf32>
    %178 = arith.addf %176, %177 : vector<8x128xf32>
    %cst_123 = arith.constant 0.000000e+00 : f32
    %179 = vector.broadcast %cst_123 : f32 to vector<8x128xf32>
    %180 = arith.maximumf %178, %179 : vector<8x128xf32>
    %c3_i32_124 = arith.constant 3 : i32
    %c3_i32_125 = arith.constant 3 : i32
    %c3_i32_126 = arith.constant 3 : i32
    %c0_i32_127 = arith.constant 0 : i32
    %c0_i32_128 = arith.constant 0 : i32
    %181 = tpu.memref_slice %arg2[%c3_i32_124, %c0_i32_127, %c0_i32_128] : memref<10x128x128xbf16, #tpu.memory_space<any>> -> memref<1x128x128xbf16, #tpu.memory_space<any>>
    %182 = tpu.memref_squeeze %181 : memref<1x128x128xbf16, #tpu.memory_space<any>> -> memref<128x128xbf16, #tpu.memory_space<any>>
    %c0_i32_129 = arith.constant 0 : i32
    %c0_i32_130 = arith.constant 0 : i32
    %183 = tpu.memref_slice %arg5[%c3_i32_125, %c0_i32_129, %c0_i32_130] : memref<10x128x128xbf16, #tpu.memory_space<vmem>> -> memref<1x128x128xbf16, #tpu.memory_space<vmem>>
    %184 = tpu.memref_squeeze %183 : memref<1x128x128xbf16, #tpu.memory_space<vmem>> -> memref<128x128xbf16, #tpu.memory_space<vmem>>
    %185 = tpu.memref_slice %arg6[%c3_i32_126] : memref<10x!tpu.dma_semaphore, #tpu.memory_space<semaphore_mem>> -> memref<1x!tpu.dma_semaphore, #tpu.memory_space<semaphore_mem>>
    %186 = tpu.memref_squeeze %185 : memref<1x!tpu.dma_semaphore, #tpu.memory_space<semaphore_mem>> -> memref<!tpu.dma_semaphore, #tpu.memory_space<semaphore_mem>>
    tpu.wait_dma2 semaphore(%186 : memref<!tpu.dma_semaphore, #tpu.memory_space<semaphore_mem>>) src(%182 : memref<128x128xbf16, #tpu.memory_space<any>>) dst(%184 : memref<128x128xbf16, #tpu.memory_space<vmem>>)
    %187 = arith.truncf %180 : vector<8x128xf32> to vector<8x128xbf16>
    %c3 = arith.constant 3 : index
    %c0_131 = arith.constant 0 : index
    %c0_132 = arith.constant 0 : index
    %188 = vector.load %arg5[%c3, %c0_131, %c0_132] : memref<10x128x128xbf16, #tpu.memory_space<vmem>>, vector<1x128x128xbf16>
    %189 = vector.shape_cast %188 : vector<1x128x128xbf16> to vector<128x128xbf16>
    %cst_133 = arith.constant dense<0.000000e+00> : vector<8x128xf32>
    %190 = tpu.matmul %187, %189, %cst_133 {dimension_numbers = #tpu.dot_dimension_numbers<[1], [0], [0], [1], [0, 0, 1, 1], [], []>} : vector<8x128xbf16>, vector<128x128xbf16>, vector<8x128xf32> -> vector<8x128xf32>
    %c3_134 = arith.constant 3 : index
    %c0_135 = arith.constant 0 : index
    %191 = vector.load %arg3[%c3_134, %c0_135] : memref<28x128xf32, #tpu.memory_space<vmem>>, vector<1x128xf32>
    %192 = vector.broadcast %191 : vector<1x128xf32> to vector<8x128xf32>
    %193 = arith.addf %190, %192 : vector<8x128xf32>
    %c16 = arith.constant 16 : index
    %c0_136 = arith.constant 0 : index
    %194 = vector.load %arg3[%c16, %c0_136] : memref<28x128xf32, #tpu.memory_space<vmem>>, vector<1x128xf32>
    %c17 = arith.constant 17 : index
    %c0_137 = arith.constant 0 : index
    %195 = vector.load %arg3[%c17, %c0_137] : memref<28x128xf32, #tpu.memory_space<vmem>>, vector<1x128xf32>
    %cst_138 = arith.constant dense<0.000000e+00> : vector<128xf32>
    %196 = vector.multi_reduction <add>, %193, %cst_138 [0] : vector<8x128xf32> to vector<128xf32>
    %197 = vector.shape_cast %196 : vector<128xf32> to vector<1x128xf32>
    %cst_139 = arith.constant 8.000000e+00 : f32
    %198 = vector.broadcast %cst_139 : f32 to vector<1x128xf32>
    %199 = arith.divf %197, %198 : vector<1x128xf32>
    %200 = arith.mulf %193, %193 : vector<8x128xf32>
    %cst_140 = arith.constant dense<0.000000e+00> : vector<128xf32>
    %201 = vector.multi_reduction <add>, %200, %cst_140 [0] : vector<8x128xf32> to vector<128xf32>
    %202 = vector.shape_cast %201 : vector<128xf32> to vector<1x128xf32>
    %cst_141 = arith.constant 8.000000e+00 : f32
    %203 = vector.broadcast %cst_141 : f32 to vector<1x128xf32>
    %204 = arith.divf %202, %203 : vector<1x128xf32>
    %205 = arith.mulf %199, %199 : vector<1x128xf32>
    %206 = arith.subf %204, %205 : vector<1x128xf32>
    %cst_142 = arith.constant 0.000000e+00 : f32
    %207 = vector.broadcast %cst_142 : f32 to vector<1x128xf32>
    %208 = arith.maximumf %206, %207 : vector<1x128xf32>
    %cst_143 = arith.constant 9.99999974E-6 : f32
    %209 = vector.broadcast %cst_143 : f32 to vector<1x128xf32>
    %210 = arith.addf %208, %209 : vector<1x128xf32>
    %211 = math.rsqrt %210 : vector<1x128xf32>
    %212 = arith.mulf %194, %211 : vector<1x128xf32>
    %213 = vector.broadcast %199 : vector<1x128xf32> to vector<8x128xf32>
    %214 = arith.subf %193, %213 : vector<8x128xf32>
    %215 = vector.broadcast %212 : vector<1x128xf32> to vector<8x128xf32>
    %216 = arith.mulf %214, %215 : vector<8x128xf32>
    %217 = vector.broadcast %195 : vector<1x128xf32> to vector<8x128xf32>
    %218 = arith.addf %216, %217 : vector<8x128xf32>
    %cst_144 = arith.constant 0.000000e+00 : f32
    %219 = vector.broadcast %cst_144 : f32 to vector<8x128xf32>
    %220 = arith.maximumf %218, %219 : vector<8x128xf32>
    %c4_i32_145 = arith.constant 4 : i32
    %c4_i32_146 = arith.constant 4 : i32
    %c4_i32_147 = arith.constant 4 : i32
    %c0_i32_148 = arith.constant 0 : i32
    %c0_i32_149 = arith.constant 0 : i32
    %221 = tpu.memref_slice %arg2[%c4_i32_145, %c0_i32_148, %c0_i32_149] : memref<10x128x128xbf16, #tpu.memory_space<any>> -> memref<1x128x128xbf16, #tpu.memory_space<any>>
    %222 = tpu.memref_squeeze %221 : memref<1x128x128xbf16, #tpu.memory_space<any>> -> memref<128x128xbf16, #tpu.memory_space<any>>
    %c0_i32_150 = arith.constant 0 : i32
    %c0_i32_151 = arith.constant 0 : i32
    %223 = tpu.memref_slice %arg5[%c4_i32_146, %c0_i32_150, %c0_i32_151] : memref<10x128x128xbf16, #tpu.memory_space<vmem>> -> memref<1x128x128xbf16, #tpu.memory_space<vmem>>
    %224 = tpu.memref_squeeze %223 : memref<1x128x128xbf16, #tpu.memory_space<vmem>> -> memref<128x128xbf16, #tpu.memory_space<vmem>>
    %225 = tpu.memref_slice %arg6[%c4_i32_147] : memref<10x!tpu.dma_semaphore, #tpu.memory_space<semaphore_mem>> -> memref<1x!tpu.dma_semaphore, #tpu.memory_space<semaphore_mem>>
    %226 = tpu.memref_squeeze %225 : memref<1x!tpu.dma_semaphore, #tpu.memory_space<semaphore_mem>> -> memref<!tpu.dma_semaphore, #tpu.memory_space<semaphore_mem>>
    tpu.wait_dma2 semaphore(%226 : memref<!tpu.dma_semaphore, #tpu.memory_space<semaphore_mem>>) src(%222 : memref<128x128xbf16, #tpu.memory_space<any>>) dst(%224 : memref<128x128xbf16, #tpu.memory_space<vmem>>)
    %227 = arith.truncf %220 : vector<8x128xf32> to vector<8x128xbf16>
    %c4 = arith.constant 4 : index
    %c0_152 = arith.constant 0 : index
    %c0_153 = arith.constant 0 : index
    %228 = vector.load %arg5[%c4, %c0_152, %c0_153] : memref<10x128x128xbf16, #tpu.memory_space<vmem>>, vector<1x128x128xbf16>
    %229 = vector.shape_cast %228 : vector<1x128x128xbf16> to vector<128x128xbf16>
    %cst_154 = arith.constant dense<0.000000e+00> : vector<8x128xf32>
    %230 = tpu.matmul %227, %229, %cst_154 {dimension_numbers = #tpu.dot_dimension_numbers<[1], [0], [0], [1], [0, 0, 1, 1], [], []>} : vector<8x128xbf16>, vector<128x128xbf16>, vector<8x128xf32> -> vector<8x128xf32>
    %c4_155 = arith.constant 4 : index
    %c0_156 = arith.constant 0 : index
    %231 = vector.load %arg3[%c4_155, %c0_156] : memref<28x128xf32, #tpu.memory_space<vmem>>, vector<1x128xf32>
    %232 = vector.broadcast %231 : vector<1x128xf32> to vector<8x128xf32>
    %233 = arith.addf %230, %232 : vector<8x128xf32>
    %234 = tpu.iota {dimensions = array<i32: 1>} : vector<8x128xi32>
    %c3_i32_157 = arith.constant 3 : i32
    %235 = vector.broadcast %c3_i32_157 : i32 to vector<8x128xi32>
    %236 = arith.cmpi slt, %234, %235 : vector<8x128xi32>
    %cst_158 = arith.constant 0.000000e+00 : f32
    %237 = vector.broadcast %cst_158 : f32 to vector<8x128xf32>
    %238 = arith.select %236, %233, %237 : vector<8x128xi1>, vector<8x128xf32>
    %c0_159 = arith.constant 0 : index
    %c0_160 = arith.constant 0 : index
    %239 = vector.load %arg1[%c0_159, %c0_160] : memref<8x128xf32, #tpu.memory_space<vmem>>, vector<8x128xf32>
    %cst_161 = arith.constant 5.000000e-01 : f32
    %240 = vector.broadcast %cst_161 : f32 to vector<8x128xf32>
    %241 = arith.mulf %240, %233 : vector<8x128xf32>
    %242 = math.exp %241 : vector<8x128xf32>
    %243 = arith.mulf %239, %242 : vector<8x128xf32>
    %244 = arith.addf %238, %243 : vector<8x128xf32>
    %c5_i32_162 = arith.constant 5 : i32
    %c5_i32_163 = arith.constant 5 : i32
    %c5_i32_164 = arith.constant 5 : i32
    %c0_i32_165 = arith.constant 0 : i32
    %c0_i32_166 = arith.constant 0 : i32
    %245 = tpu.memref_slice %arg2[%c5_i32_162, %c0_i32_165, %c0_i32_166] : memref<10x128x128xbf16, #tpu.memory_space<any>> -> memref<1x128x128xbf16, #tpu.memory_space<any>>
    %246 = tpu.memref_squeeze %245 : memref<1x128x128xbf16, #tpu.memory_space<any>> -> memref<128x128xbf16, #tpu.memory_space<any>>
    %c0_i32_167 = arith.constant 0 : i32
    %c0_i32_168 = arith.constant 0 : i32
    %247 = tpu.memref_slice %arg5[%c5_i32_163, %c0_i32_167, %c0_i32_168] : memref<10x128x128xbf16, #tpu.memory_space<vmem>> -> memref<1x128x128xbf16, #tpu.memory_space<vmem>>
    %248 = tpu.memref_squeeze %247 : memref<1x128x128xbf16, #tpu.memory_space<vmem>> -> memref<128x128xbf16, #tpu.memory_space<vmem>>
    %249 = tpu.memref_slice %arg6[%c5_i32_164] : memref<10x!tpu.dma_semaphore, #tpu.memory_space<semaphore_mem>> -> memref<1x!tpu.dma_semaphore, #tpu.memory_space<semaphore_mem>>
    %250 = tpu.memref_squeeze %249 : memref<1x!tpu.dma_semaphore, #tpu.memory_space<semaphore_mem>> -> memref<!tpu.dma_semaphore, #tpu.memory_space<semaphore_mem>>
    tpu.wait_dma2 semaphore(%250 : memref<!tpu.dma_semaphore, #tpu.memory_space<semaphore_mem>>) src(%246 : memref<128x128xbf16, #tpu.memory_space<any>>) dst(%248 : memref<128x128xbf16, #tpu.memory_space<vmem>>)
    %251 = arith.truncf %244 : vector<8x128xf32> to vector<8x128xbf16>
    %c5 = arith.constant 5 : index
    %c0_169 = arith.constant 0 : index
    %c0_170 = arith.constant 0 : index
    %252 = vector.load %arg5[%c5, %c0_169, %c0_170] : memref<10x128x128xbf16, #tpu.memory_space<vmem>>, vector<1x128x128xbf16>
    %253 = vector.shape_cast %252 : vector<1x128x128xbf16> to vector<128x128xbf16>
    %cst_171 = arith.constant dense<0.000000e+00> : vector<8x128xf32>
    %254 = tpu.matmul %251, %253, %cst_171 {dimension_numbers = #tpu.dot_dimension_numbers<[1], [0], [0], [1], [0, 0, 1, 1], [], []>} : vector<8x128xbf16>, vector<128x128xbf16>, vector<8x128xf32> -> vector<8x128xf32>
    %c5_172 = arith.constant 5 : index
    %c0_173 = arith.constant 0 : index
    %255 = vector.load %arg3[%c5_172, %c0_173] : memref<28x128xf32, #tpu.memory_space<vmem>>, vector<1x128xf32>
    %256 = vector.broadcast %255 : vector<1x128xf32> to vector<8x128xf32>
    %257 = arith.addf %254, %256 : vector<8x128xf32>
    %c18 = arith.constant 18 : index
    %c0_174 = arith.constant 0 : index
    %258 = vector.load %arg3[%c18, %c0_174] : memref<28x128xf32, #tpu.memory_space<vmem>>, vector<1x128xf32>
    %c19 = arith.constant 19 : index
    %c0_175 = arith.constant 0 : index
    %259 = vector.load %arg3[%c19, %c0_175] : memref<28x128xf32, #tpu.memory_space<vmem>>, vector<1x128xf32>
    %cst_176 = arith.constant dense<0.000000e+00> : vector<128xf32>
    %260 = vector.multi_reduction <add>, %257, %cst_176 [0] : vector<8x128xf32> to vector<128xf32>
    %261 = vector.shape_cast %260 : vector<128xf32> to vector<1x128xf32>
    %cst_177 = arith.constant 8.000000e+00 : f32
    %262 = vector.broadcast %cst_177 : f32 to vector<1x128xf32>
    %263 = arith.divf %261, %262 : vector<1x128xf32>
    %264 = arith.mulf %257, %257 : vector<8x128xf32>
    %cst_178 = arith.constant dense<0.000000e+00> : vector<128xf32>
    %265 = vector.multi_reduction <add>, %264, %cst_178 [0] : vector<8x128xf32> to vector<128xf32>
    %266 = vector.shape_cast %265 : vector<128xf32> to vector<1x128xf32>
    %cst_179 = arith.constant 8.000000e+00 : f32
    %267 = vector.broadcast %cst_179 : f32 to vector<1x128xf32>
    %268 = arith.divf %266, %267 : vector<1x128xf32>
    %269 = arith.mulf %263, %263 : vector<1x128xf32>
    %270 = arith.subf %268, %269 : vector<1x128xf32>
    %cst_180 = arith.constant 0.000000e+00 : f32
    %271 = vector.broadcast %cst_180 : f32 to vector<1x128xf32>
    %272 = arith.maximumf %270, %271 : vector<1x128xf32>
    %cst_181 = arith.constant 9.99999974E-6 : f32
    %273 = vector.broadcast %cst_181 : f32 to vector<1x128xf32>
    %274 = arith.addf %272, %273 : vector<1x128xf32>
    %275 = math.rsqrt %274 : vector<1x128xf32>
    %276 = arith.mulf %258, %275 : vector<1x128xf32>
    %277 = vector.broadcast %263 : vector<1x128xf32> to vector<8x128xf32>
    %278 = arith.subf %257, %277 : vector<8x128xf32>
    %279 = vector.broadcast %276 : vector<1x128xf32> to vector<8x128xf32>
    %280 = arith.mulf %278, %279 : vector<8x128xf32>
    %281 = vector.broadcast %259 : vector<1x128xf32> to vector<8x128xf32>
    %282 = arith.addf %280, %281 : vector<8x128xf32>
    %cst_182 = arith.constant 0.000000e+00 : f32
    %283 = vector.broadcast %cst_182 : f32 to vector<8x128xf32>
    %284 = arith.maximumf %282, %283 : vector<8x128xf32>
    %c6_i32_183 = arith.constant 6 : i32
    %c6_i32_184 = arith.constant 6 : i32
    %c6_i32_185 = arith.constant 6 : i32
    %c0_i32_186 = arith.constant 0 : i32
    %c0_i32_187 = arith.constant 0 : i32
    %285 = tpu.memref_slice %arg2[%c6_i32_183, %c0_i32_186, %c0_i32_187] : memref<10x128x128xbf16, #tpu.memory_space<any>> -> memref<1x128x128xbf16, #tpu.memory_space<any>>
    %286 = tpu.memref_squeeze %285 : memref<1x128x128xbf16, #tpu.memory_space<any>> -> memref<128x128xbf16, #tpu.memory_space<any>>
    %c0_i32_188 = arith.constant 0 : i32
    %c0_i32_189 = arith.constant 0 : i32
    %287 = tpu.memref_slice %arg5[%c6_i32_184, %c0_i32_188, %c0_i32_189] : memref<10x128x128xbf16, #tpu.memory_space<vmem>> -> memref<1x128x128xbf16, #tpu.memory_space<vmem>>
    %288 = tpu.memref_squeeze %287 : memref<1x128x128xbf16, #tpu.memory_space<vmem>> -> memref<128x128xbf16, #tpu.memory_space<vmem>>
    %289 = tpu.memref_slice %arg6[%c6_i32_185] : memref<10x!tpu.dma_semaphore, #tpu.memory_space<semaphore_mem>> -> memref<1x!tpu.dma_semaphore, #tpu.memory_space<semaphore_mem>>
    %290 = tpu.memref_squeeze %289 : memref<1x!tpu.dma_semaphore, #tpu.memory_space<semaphore_mem>> -> memref<!tpu.dma_semaphore, #tpu.memory_space<semaphore_mem>>
    tpu.wait_dma2 semaphore(%290 : memref<!tpu.dma_semaphore, #tpu.memory_space<semaphore_mem>>) src(%286 : memref<128x128xbf16, #tpu.memory_space<any>>) dst(%288 : memref<128x128xbf16, #tpu.memory_space<vmem>>)
    %291 = arith.truncf %284 : vector<8x128xf32> to vector<8x128xbf16>
    %c6 = arith.constant 6 : index
    %c0_190 = arith.constant 0 : index
    %c0_191 = arith.constant 0 : index
    %292 = vector.load %arg5[%c6, %c0_190, %c0_191] : memref<10x128x128xbf16, #tpu.memory_space<vmem>>, vector<1x128x128xbf16>
    %293 = vector.shape_cast %292 : vector<1x128x128xbf16> to vector<128x128xbf16>
    %cst_192 = arith.constant dense<0.000000e+00> : vector<8x128xf32>
    %294 = tpu.matmul %291, %293, %cst_192 {dimension_numbers = #tpu.dot_dimension_numbers<[1], [0], [0], [1], [0, 0, 1, 1], [], []>} : vector<8x128xbf16>, vector<128x128xbf16>, vector<8x128xf32> -> vector<8x128xf32>
    %c6_193 = arith.constant 6 : index
    %c0_194 = arith.constant 0 : index
    %295 = vector.load %arg3[%c6_193, %c0_194] : memref<28x128xf32, #tpu.memory_space<vmem>>, vector<1x128xf32>
    %296 = vector.broadcast %295 : vector<1x128xf32> to vector<8x128xf32>
    %297 = arith.addf %294, %296 : vector<8x128xf32>
    %c20 = arith.constant 20 : index
    %c0_195 = arith.constant 0 : index
    %298 = vector.load %arg3[%c20, %c0_195] : memref<28x128xf32, #tpu.memory_space<vmem>>, vector<1x128xf32>
    %c21 = arith.constant 21 : index
    %c0_196 = arith.constant 0 : index
    %299 = vector.load %arg3[%c21, %c0_196] : memref<28x128xf32, #tpu.memory_space<vmem>>, vector<1x128xf32>
    %cst_197 = arith.constant dense<0.000000e+00> : vector<128xf32>
    %300 = vector.multi_reduction <add>, %297, %cst_197 [0] : vector<8x128xf32> to vector<128xf32>
    %301 = vector.shape_cast %300 : vector<128xf32> to vector<1x128xf32>
    %cst_198 = arith.constant 8.000000e+00 : f32
    %302 = vector.broadcast %cst_198 : f32 to vector<1x128xf32>
    %303 = arith.divf %301, %302 : vector<1x128xf32>
    %304 = arith.mulf %297, %297 : vector<8x128xf32>
    %cst_199 = arith.constant dense<0.000000e+00> : vector<128xf32>
    %305 = vector.multi_reduction <add>, %304, %cst_199 [0] : vector<8x128xf32> to vector<128xf32>
    %306 = vector.shape_cast %305 : vector<128xf32> to vector<1x128xf32>
    %cst_200 = arith.constant 8.000000e+00 : f32
    %307 = vector.broadcast %cst_200 : f32 to vector<1x128xf32>
    %308 = arith.divf %306, %307 : vector<1x128xf32>
    %309 = arith.mulf %303, %303 : vector<1x128xf32>
    %310 = arith.subf %308, %309 : vector<1x128xf32>
    %cst_201 = arith.constant 0.000000e+00 : f32
    %311 = vector.broadcast %cst_201 : f32 to vector<1x128xf32>
    %312 = arith.maximumf %310, %311 : vector<1x128xf32>
    %cst_202 = arith.constant 9.99999974E-6 : f32
    %313 = vector.broadcast %cst_202 : f32 to vector<1x128xf32>
    %314 = arith.addf %312, %313 : vector<1x128xf32>
    %315 = math.rsqrt %314 : vector<1x128xf32>
    %316 = arith.mulf %298, %315 : vector<1x128xf32>
    %317 = vector.broadcast %303 : vector<1x128xf32> to vector<8x128xf32>
    %318 = arith.subf %297, %317 : vector<8x128xf32>
    %319 = vector.broadcast %316 : vector<1x128xf32> to vector<8x128xf32>
    %320 = arith.mulf %318, %319 : vector<8x128xf32>
    %321 = vector.broadcast %299 : vector<1x128xf32> to vector<8x128xf32>
    %322 = arith.addf %320, %321 : vector<8x128xf32>
    %cst_203 = arith.constant 0.000000e+00 : f32
    %323 = vector.broadcast %cst_203 : f32 to vector<8x128xf32>
    %324 = arith.maximumf %322, %323 : vector<8x128xf32>
    %c7_i32_204 = arith.constant 7 : i32
    %c7_i32_205 = arith.constant 7 : i32
    %c7_i32_206 = arith.constant 7 : i32
    %c0_i32_207 = arith.constant 0 : i32
    %c0_i32_208 = arith.constant 0 : i32
    %325 = tpu.memref_slice %arg2[%c7_i32_204, %c0_i32_207, %c0_i32_208] : memref<10x128x128xbf16, #tpu.memory_space<any>> -> memref<1x128x128xbf16, #tpu.memory_space<any>>
    %326 = tpu.memref_squeeze %325 : memref<1x128x128xbf16, #tpu.memory_space<any>> -> memref<128x128xbf16, #tpu.memory_space<any>>
    %c0_i32_209 = arith.constant 0 : i32
    %c0_i32_210 = arith.constant 0 : i32
    %327 = tpu.memref_slice %arg5[%c7_i32_205, %c0_i32_209, %c0_i32_210] : memref<10x128x128xbf16, #tpu.memory_space<vmem>> -> memref<1x128x128xbf16, #tpu.memory_space<vmem>>
    %328 = tpu.memref_squeeze %327 : memref<1x128x128xbf16, #tpu.memory_space<vmem>> -> memref<128x128xbf16, #tpu.memory_space<vmem>>
    %329 = tpu.memref_slice %arg6[%c7_i32_206] : memref<10x!tpu.dma_semaphore, #tpu.memory_space<semaphore_mem>> -> memref<1x!tpu.dma_semaphore, #tpu.memory_space<semaphore_mem>>
    %330 = tpu.memref_squeeze %329 : memref<1x!tpu.dma_semaphore, #tpu.memory_space<semaphore_mem>> -> memref<!tpu.dma_semaphore, #tpu.memory_space<semaphore_mem>>
    tpu.wait_dma2 semaphore(%330 : memref<!tpu.dma_semaphore, #tpu.memory_space<semaphore_mem>>) src(%326 : memref<128x128xbf16, #tpu.memory_space<any>>) dst(%328 : memref<128x128xbf16, #tpu.memory_space<vmem>>)
    %331 = arith.truncf %324 : vector<8x128xf32> to vector<8x128xbf16>
    %c7 = arith.constant 7 : index
    %c0_211 = arith.constant 0 : index
    %c0_212 = arith.constant 0 : index
    %332 = vector.load %arg5[%c7, %c0_211, %c0_212] : memref<10x128x128xbf16, #tpu.memory_space<vmem>>, vector<1x128x128xbf16>
    %333 = vector.shape_cast %332 : vector<1x128x128xbf16> to vector<128x128xbf16>
    %cst_213 = arith.constant dense<0.000000e+00> : vector<8x128xf32>
    %334 = tpu.matmul %331, %333, %cst_213 {dimension_numbers = #tpu.dot_dimension_numbers<[1], [0], [0], [1], [0, 0, 1, 1], [], []>} : vector<8x128xbf16>, vector<128x128xbf16>, vector<8x128xf32> -> vector<8x128xf32>
    %c7_214 = arith.constant 7 : index
    %c0_215 = arith.constant 0 : index
    %335 = vector.load %arg3[%c7_214, %c0_215] : memref<28x128xf32, #tpu.memory_space<vmem>>, vector<1x128xf32>
    %336 = vector.broadcast %335 : vector<1x128xf32> to vector<8x128xf32>
    %337 = arith.addf %334, %336 : vector<8x128xf32>
    %c22 = arith.constant 22 : index
    %c0_216 = arith.constant 0 : index
    %338 = vector.load %arg3[%c22, %c0_216] : memref<28x128xf32, #tpu.memory_space<vmem>>, vector<1x128xf32>
    %c23 = arith.constant 23 : index
    %c0_217 = arith.constant 0 : index
    %339 = vector.load %arg3[%c23, %c0_217] : memref<28x128xf32, #tpu.memory_space<vmem>>, vector<1x128xf32>
    %cst_218 = arith.constant dense<0.000000e+00> : vector<128xf32>
    %340 = vector.multi_reduction <add>, %337, %cst_218 [0] : vector<8x128xf32> to vector<128xf32>
    %341 = vector.shape_cast %340 : vector<128xf32> to vector<1x128xf32>
    %cst_219 = arith.constant 8.000000e+00 : f32
    %342 = vector.broadcast %cst_219 : f32 to vector<1x128xf32>
    %343 = arith.divf %341, %342 : vector<1x128xf32>
    %344 = arith.mulf %337, %337 : vector<8x128xf32>
    %cst_220 = arith.constant dense<0.000000e+00> : vector<128xf32>
    %345 = vector.multi_reduction <add>, %344, %cst_220 [0] : vector<8x128xf32> to vector<128xf32>
    %346 = vector.shape_cast %345 : vector<128xf32> to vector<1x128xf32>
    %cst_221 = arith.constant 8.000000e+00 : f32
    %347 = vector.broadcast %cst_221 : f32 to vector<1x128xf32>
    %348 = arith.divf %346, %347 : vector<1x128xf32>
    %349 = arith.mulf %343, %343 : vector<1x128xf32>
    %350 = arith.subf %348, %349 : vector<1x128xf32>
    %cst_222 = arith.constant 0.000000e+00 : f32
    %351 = vector.broadcast %cst_222 : f32 to vector<1x128xf32>
    %352 = arith.maximumf %350, %351 : vector<1x128xf32>
    %cst_223 = arith.constant 9.99999974E-6 : f32
    %353 = vector.broadcast %cst_223 : f32 to vector<1x128xf32>
    %354 = arith.addf %352, %353 : vector<1x128xf32>
    %355 = math.rsqrt %354 : vector<1x128xf32>
    %356 = arith.mulf %338, %355 : vector<1x128xf32>
    %357 = vector.broadcast %343 : vector<1x128xf32> to vector<8x128xf32>
    %358 = arith.subf %337, %357 : vector<8x128xf32>
    %359 = vector.broadcast %356 : vector<1x128xf32> to vector<8x128xf32>
    %360 = arith.mulf %358, %359 : vector<8x128xf32>
    %361 = vector.broadcast %339 : vector<1x128xf32> to vector<8x128xf32>
    %362 = arith.addf %360, %361 : vector<8x128xf32>
    %cst_224 = arith.constant 0.000000e+00 : f32
    %363 = vector.broadcast %cst_224 : f32 to vector<8x128xf32>
    %364 = arith.maximumf %362, %363 : vector<8x128xf32>
    %c8_i32_225 = arith.constant 8 : i32
    %c8_i32_226 = arith.constant 8 : i32
    %c8_i32_227 = arith.constant 8 : i32
    %c0_i32_228 = arith.constant 0 : i32
    %c0_i32_229 = arith.constant 0 : i32
    %365 = tpu.memref_slice %arg2[%c8_i32_225, %c0_i32_228, %c0_i32_229] : memref<10x128x128xbf16, #tpu.memory_space<any>> -> memref<1x128x128xbf16, #tpu.memory_space<any>>
    %366 = tpu.memref_squeeze %365 : memref<1x128x128xbf16, #tpu.memory_space<any>> -> memref<128x128xbf16, #tpu.memory_space<any>>
    %c0_i32_230 = arith.constant 0 : i32
    %c0_i32_231 = arith.constant 0 : i32
    %367 = tpu.memref_slice %arg5[%c8_i32_226, %c0_i32_230, %c0_i32_231] : memref<10x128x128xbf16, #tpu.memory_space<vmem>> -> memref<1x128x128xbf16, #tpu.memory_space<vmem>>
    %368 = tpu.memref_squeeze %367 : memref<1x128x128xbf16, #tpu.memory_space<vmem>> -> memref<128x128xbf16, #tpu.memory_space<vmem>>
    %369 = tpu.memref_slice %arg6[%c8_i32_227] : memref<10x!tpu.dma_semaphore, #tpu.memory_space<semaphore_mem>> -> memref<1x!tpu.dma_semaphore, #tpu.memory_space<semaphore_mem>>
    %370 = tpu.memref_squeeze %369 : memref<1x!tpu.dma_semaphore, #tpu.memory_space<semaphore_mem>> -> memref<!tpu.dma_semaphore, #tpu.memory_space<semaphore_mem>>
    tpu.wait_dma2 semaphore(%370 : memref<!tpu.dma_semaphore, #tpu.memory_space<semaphore_mem>>) src(%366 : memref<128x128xbf16, #tpu.memory_space<any>>) dst(%368 : memref<128x128xbf16, #tpu.memory_space<vmem>>)
    %371 = arith.truncf %364 : vector<8x128xf32> to vector<8x128xbf16>
    %c8 = arith.constant 8 : index
    %c0_232 = arith.constant 0 : index
    %c0_233 = arith.constant 0 : index
    %372 = vector.load %arg5[%c8, %c0_232, %c0_233] : memref<10x128x128xbf16, #tpu.memory_space<vmem>>, vector<1x128x128xbf16>
    %373 = vector.shape_cast %372 : vector<1x128x128xbf16> to vector<128x128xbf16>
    %cst_234 = arith.constant dense<0.000000e+00> : vector<8x128xf32>
    %374 = tpu.matmul %371, %373, %cst_234 {dimension_numbers = #tpu.dot_dimension_numbers<[1], [0], [0], [1], [0, 0, 1, 1], [], []>} : vector<8x128xbf16>, vector<128x128xbf16>, vector<8x128xf32> -> vector<8x128xf32>
    %c8_235 = arith.constant 8 : index
    %c0_236 = arith.constant 0 : index
    %375 = vector.load %arg3[%c8_235, %c0_236] : memref<28x128xf32, #tpu.memory_space<vmem>>, vector<1x128xf32>
    %376 = vector.broadcast %375 : vector<1x128xf32> to vector<8x128xf32>
    %377 = arith.addf %374, %376 : vector<8x128xf32>
    %c24 = arith.constant 24 : index
    %c0_237 = arith.constant 0 : index
    %378 = vector.load %arg3[%c24, %c0_237] : memref<28x128xf32, #tpu.memory_space<vmem>>, vector<1x128xf32>
    %c25 = arith.constant 25 : index
    %c0_238 = arith.constant 0 : index
    %379 = vector.load %arg3[%c25, %c0_238] : memref<28x128xf32, #tpu.memory_space<vmem>>, vector<1x128xf32>
    %cst_239 = arith.constant dense<0.000000e+00> : vector<128xf32>
    %380 = vector.multi_reduction <add>, %377, %cst_239 [0] : vector<8x128xf32> to vector<128xf32>
    %381 = vector.shape_cast %380 : vector<128xf32> to vector<1x128xf32>
    %cst_240 = arith.constant 8.000000e+00 : f32
    %382 = vector.broadcast %cst_240 : f32 to vector<1x128xf32>
    %383 = arith.divf %381, %382 : vector<1x128xf32>
    %384 = arith.mulf %377, %377 : vector<8x128xf32>
    %cst_241 = arith.constant dense<0.000000e+00> : vector<128xf32>
    %385 = vector.multi_reduction <add>, %384, %cst_241 [0] : vector<8x128xf32> to vector<128xf32>
    %386 = vector.shape_cast %385 : vector<128xf32> to vector<1x128xf32>
    %cst_242 = arith.constant 8.000000e+00 : f32
    %387 = vector.broadcast %cst_242 : f32 to vector<1x128xf32>
    %388 = arith.divf %386, %387 : vector<1x128xf32>
    %389 = arith.mulf %383, %383 : vector<1x128xf32>
    %390 = arith.subf %388, %389 : vector<1x128xf32>
    %cst_243 = arith.constant 0.000000e+00 : f32
    %391 = vector.broadcast %cst_243 : f32 to vector<1x128xf32>
    %392 = arith.maximumf %390, %391 : vector<1x128xf32>
    %cst_244 = arith.constant 9.99999974E-6 : f32
    %393 = vector.broadcast %cst_244 : f32 to vector<1x128xf32>
    %394 = arith.addf %392, %393 : vector<1x128xf32>
    %395 = math.rsqrt %394 : vector<1x128xf32>
    %396 = arith.mulf %378, %395 : vector<1x128xf32>
    %397 = vector.broadcast %383 : vector<1x128xf32> to vector<8x128xf32>
    %398 = arith.subf %377, %397 : vector<8x128xf32>
    %399 = vector.broadcast %396 : vector<1x128xf32> to vector<8x128xf32>
    %400 = arith.mulf %398, %399 : vector<8x128xf32>
    %401 = vector.broadcast %379 : vector<1x128xf32> to vector<8x128xf32>
    %402 = arith.addf %400, %401 : vector<8x128xf32>
    %cst_245 = arith.constant 0.000000e+00 : f32
    %403 = vector.broadcast %cst_245 : f32 to vector<8x128xf32>
    %404 = arith.maximumf %402, %403 : vector<8x128xf32>
    %c9_i32_246 = arith.constant 9 : i32
    %c9_i32_247 = arith.constant 9 : i32
    %c9_i32_248 = arith.constant 9 : i32
    %c0_i32_249 = arith.constant 0 : i32
    %c0_i32_250 = arith.constant 0 : i32
    %405 = tpu.memref_slice %arg2[%c9_i32_246, %c0_i32_249, %c0_i32_250] : memref<10x128x128xbf16, #tpu.memory_space<any>> -> memref<1x128x128xbf16, #tpu.memory_space<any>>
    %406 = tpu.memref_squeeze %405 : memref<1x128x128xbf16, #tpu.memory_space<any>> -> memref<128x128xbf16, #tpu.memory_space<any>>
    %c0_i32_251 = arith.constant 0 : i32
    %c0_i32_252 = arith.constant 0 : i32
    %407 = tpu.memref_slice %arg5[%c9_i32_247, %c0_i32_251, %c0_i32_252] : memref<10x128x128xbf16, #tpu.memory_space<vmem>> -> memref<1x128x128xbf16, #tpu.memory_space<vmem>>
    %408 = tpu.memref_squeeze %407 : memref<1x128x128xbf16, #tpu.memory_space<vmem>> -> memref<128x128xbf16, #tpu.memory_space<vmem>>
    %409 = tpu.memref_slice %arg6[%c9_i32_248] : memref<10x!tpu.dma_semaphore, #tpu.memory_space<semaphore_mem>> -> memref<1x!tpu.dma_semaphore, #tpu.memory_space<semaphore_mem>>
    %410 = tpu.memref_squeeze %409 : memref<1x!tpu.dma_semaphore, #tpu.memory_space<semaphore_mem>> -> memref<!tpu.dma_semaphore, #tpu.memory_space<semaphore_mem>>
    tpu.wait_dma2 semaphore(%410 : memref<!tpu.dma_semaphore, #tpu.memory_space<semaphore_mem>>) src(%406 : memref<128x128xbf16, #tpu.memory_space<any>>) dst(%408 : memref<128x128xbf16, #tpu.memory_space<vmem>>)
    %411 = arith.truncf %404 : vector<8x128xf32> to vector<8x128xbf16>
    %c9 = arith.constant 9 : index
    %c0_253 = arith.constant 0 : index
    %c0_254 = arith.constant 0 : index
    %412 = vector.load %arg5[%c9, %c0_253, %c0_254] : memref<10x128x128xbf16, #tpu.memory_space<vmem>>, vector<1x128x128xbf16>
    %413 = vector.shape_cast %412 : vector<1x128x128xbf16> to vector<128x128xbf16>
    %cst_255 = arith.constant dense<0.000000e+00> : vector<8x128xf32>
    %414 = tpu.matmul %411, %413, %cst_255 {dimension_numbers = #tpu.dot_dimension_numbers<[1], [0], [0], [1], [0, 0, 1, 1], [], []>} : vector<8x128xbf16>, vector<128x128xbf16>, vector<8x128xf32> -> vector<8x128xf32>
    %c9_256 = arith.constant 9 : index
    %c0_257 = arith.constant 0 : index
    %415 = vector.load %arg3[%c9_256, %c0_257] : memref<28x128xf32, #tpu.memory_space<vmem>>, vector<1x128xf32>
    %416 = vector.broadcast %415 : vector<1x128xf32> to vector<8x128xf32>
    %417 = arith.addf %414, %416 : vector<8x128xf32>
    %c26 = arith.constant 26 : index
    %c0_258 = arith.constant 0 : index
    %418 = vector.load %arg3[%c26, %c0_258] : memref<28x128xf32, #tpu.memory_space<vmem>>, vector<1x128xf32>
    %c27 = arith.constant 27 : index
    %c0_259 = arith.constant 0 : index
    %419 = vector.load %arg3[%c27, %c0_259] : memref<28x128xf32, #tpu.memory_space<vmem>>, vector<1x128xf32>
    %cst_260 = arith.constant dense<0.000000e+00> : vector<128xf32>
    %420 = vector.multi_reduction <add>, %417, %cst_260 [0] : vector<8x128xf32> to vector<128xf32>
    %421 = vector.shape_cast %420 : vector<128xf32> to vector<1x128xf32>
    %cst_261 = arith.constant 8.000000e+00 : f32
    %422 = vector.broadcast %cst_261 : f32 to vector<1x128xf32>
    %423 = arith.divf %421, %422 : vector<1x128xf32>
    %424 = arith.mulf %417, %417 : vector<8x128xf32>
    %cst_262 = arith.constant dense<0.000000e+00> : vector<128xf32>
    %425 = vector.multi_reduction <add>, %424, %cst_262 [0] : vector<8x128xf32> to vector<128xf32>
    %426 = vector.shape_cast %425 : vector<128xf32> to vector<1x128xf32>
    %cst_263 = arith.constant 8.000000e+00 : f32
    %427 = vector.broadcast %cst_263 : f32 to vector<1x128xf32>
    %428 = arith.divf %426, %427 : vector<1x128xf32>
    %429 = arith.mulf %423, %423 : vector<1x128xf32>
    %430 = arith.subf %428, %429 : vector<1x128xf32>
    %cst_264 = arith.constant 0.000000e+00 : f32
    %431 = vector.broadcast %cst_264 : f32 to vector<1x128xf32>
    %432 = arith.maximumf %430, %431 : vector<1x128xf32>
    %cst_265 = arith.constant 9.99999974E-6 : f32
    %433 = vector.broadcast %cst_265 : f32 to vector<1x128xf32>
    %434 = arith.addf %432, %433 : vector<1x128xf32>
    %435 = math.rsqrt %434 : vector<1x128xf32>
    %436 = arith.mulf %418, %435 : vector<1x128xf32>
    %437 = vector.broadcast %423 : vector<1x128xf32> to vector<8x128xf32>
    %438 = arith.subf %417, %437 : vector<8x128xf32>
    %439 = vector.broadcast %436 : vector<1x128xf32> to vector<8x128xf32>
    %440 = arith.mulf %438, %439 : vector<8x128xf32>
    %441 = vector.broadcast %419 : vector<1x128xf32> to vector<8x128xf32>
    %442 = arith.addf %440, %441 : vector<8x128xf32>
    %c0_266 = arith.constant 0 : index
    %c0_267 = arith.constant 0 : index
    %443 = vector.load %arg4[%c0_266, %c0_267] : memref<8x256xf32, #tpu.memory_space<vmem>>, vector<8x128xf32>
    tpu.vector_store %arg4[%c0_266, %c0_267], %442 {strides = array<i32>} : memref<8x256xf32, #tpu.memory_space<vmem>>, vector<8x128xf32>,
    %c0_268 = arith.constant 0 : index
    %c128 = arith.constant 128 : index
    %444 = vector.load %arg4[%c0_268, %c128] : memref<8x256xf32, #tpu.memory_space<vmem>>, vector<8x128xf32>
    tpu.vector_store %arg4[%c0_268, %c128], %233 {strides = array<i32>} : memref<8x256xf32, #tpu.memory_space<vmem>>, vector<8x128xf32>,
    return
  }
}

</mosaic_0001>

<llo_original>
// kernel: tpu_custom_call.1
$region0: #{tpu_custom_call.1}
  #allocation0 [shape = 'u32[]', space=smem, size = 0x4, offset = 0x4, fixed_abs, tag = 'smem constant byte address 0x4 - core index']
  #allocation1 [shape = 'u32[144,128]{1,0:T(1,128)}', space=vmem, size = 0x12000, scoped, tag = 'internal scratch']
  #allocation2 [shape = 'bf16[10,128,128]{2,1,0:T(16,128)(2,1)}', space=vmem, size = 0x50000, scoped, tag = 'scratch operand']
  #allocation3 [shape = 's32[10]{0}', space=sflag, size = 0x28, scoped, tag = 'scratch operand']
  #allocation11 [shape = 's32[]', space=sflag, size = 0x4, offset = 0, fixed_abs, tag = 'sflag constant byte address 0x0 - dummy sync flag']
  #allocation12 [shape = 's32[]', space=sflag, size = 0x4, offset = 0, fixed_abs, tag = 'sflag constant byte address 0x0 - dummy sync flag']
  #allocation13 [shape = 'u32[]', space=smem, size = 0x4, offset = 0x44, fixed_abs, tag = 'smem constant byte address 0x44 - assertion arg 0']
  #allocation14 [shape = 'u32[]', space=smem, size = 0x4, offset = 0x48, fixed_abs, tag = 'smem constant byte address 0x48 - assertion arg 1']
  #allocation15 [shape = 's32[]', space=sflag, size = 0x4, offset = 0, fixed_abs, tag = 'sflag constant byte address 0x0 - dummy sync flag']
  #allocation16 [shape = 's32[]', space=sflag, size = 0x4, offset = 0, fixed_abs, tag = 'sflag constant byte address 0x0 - dummy sync flag']
  #allocation17 [shape = 's32[]', space=sflag, size = 0x4, offset = 0, fixed_abs, tag = 'sflag constant byte address 0x0 - dummy sync flag']
  #allocation18 [shape = 's32[]', space=sflag, size = 0x4, offset = 0, fixed_abs, tag = 'sflag constant byte address 0x0 - dummy sync flag']
  #allocation19 [shape = 's32[]', space=sflag, size = 0x4, offset = 0, fixed_abs, tag = 'sflag constant byte address 0x0 - dummy sync flag']
  #allocation20 [shape = 's32[]', space=sflag, size = 0x4, offset = 0, fixed_abs, tag = 'sflag constant byte address 0x0 - dummy sync flag']
  #allocation21 [shape = 's32[]', space=sflag, size = 0x4, offset = 0, fixed_abs, tag = 'sflag constant byte address 0x0 - dummy sync flag']
  #allocation22 [shape = 's32[]', space=sflag, size = 0x4, offset = 0, fixed_abs, tag = 'sflag constant byte address 0x0 - dummy sync flag']
  #allocation23 [shape = 's32[]', space=sflag, size = 0x4, offset = 0, fixed_abs, tag = 'sflag constant byte address 0x0 - dummy sync flag']
  #allocation24 [shape = 's32[]', space=sflag, size = 0x4, offset = 0, fixed_abs, tag = 'sflag constant byte address 0x0 - dummy sync flag']
  #allocation25 [shape = 's32[]', space=sflag, size = 0x4, offset = 0, fixed_abs, tag = 'sflag constant byte address 0x0 - dummy sync flag']
  #allocation26 [shape = 's32[]', space=sflag, size = 0x4, offset = 0, fixed_abs, tag = 'sflag constant byte address 0x0 - dummy sync flag']
  #allocation27 [shape = 's32[]', space=sflag, size = 0x4, offset = 0, fixed_abs, tag = 'sflag constant byte address 0x0 - dummy sync flag']
  #allocation28 [shape = 's32[]', space=sflag, size = 0x4, offset = 0, fixed_abs, tag = 'sflag constant byte address 0x0 - dummy sync flag']
  #allocation29 [shape = 's32[]', space=sflag, size = 0x4, offset = 0, fixed_abs, tag = 'sflag constant byte address 0x0 - dummy sync flag']
  #allocation30 [shape = 's32[]', space=sflag, size = 0x4, offset = 0, fixed_abs, tag = 'sflag constant byte address 0x0 - dummy sync flag']
  #allocation31 [shape = 's32[]', space=sflag, size = 0x4, offset = 0, fixed_abs, tag = 'sflag constant byte address 0x0 - dummy sync flag']
  #allocation32 [shape = 's32[]', space=sflag, size = 0x4, offset = 0, fixed_abs, tag = 'sflag constant byte address 0x0 - dummy sync flag']
  %s0 = inlined_call_operand.hbm [shape: f32[8,128], index: 0, kind: input, shape index: {}]
  %s1 = inlined_call_operand.hbm [shape: f32[8,128], index: 1, kind: input, shape index: {}]
  %s2 = inlined_call_operand.hbm [shape: bf16[10,128,128], index: 2, kind: input, shape index: {}]
  %s3 = inlined_call_operand.hbm [shape: f32[28,128], index: 3, kind: input, shape index: {}]
  %s4 = inlined_call_operand.hbm [shape: f32[8,256], index: 4, kind: output, shape index: {}]
  %s5 = sld [smem:[#allocation0]]
  $region74: #{tpu_custom_call.1} parent=0
    _
  %s7 = ssub.s32 1, %s5
  %s8 = scalar_select 0, %s7, %s5
  $region1: #{tpu_custom_call.1} parent=0
    #allocation4 [shape = 'u8[4096]{0}', space=vmem, size = 0x1000, scoped, tag = 'input window, operand 0, single buffered']
    #allocation5 [shape = 's32[1]{0}', space=sflag, size = 0x4, scoped, tag = 'scoped memory for tpu_custom_call.1']
    #allocation6 [shape = 's32[1]{0}', space=sflag, size = 0x4, scoped, tag = 'scoped memory for tpu_custom_call.1']
    #allocation7 [shape = 'u8[4096]{0}', space=vmem, size = 0x1000, scoped, tag = 'input window, operand 1, single buffered']
    #allocation8 [shape = 's32[1]{0}', space=sflag, size = 0x4, scoped, tag = 'scoped memory for tpu_custom_call.1']
    #allocation9 [shape = 'u8[16384]{0}', space=vmem, size = 0x4000, scoped, tag = 'input window, operand 3, single buffered']
    #allocation10 [shape = 'u8[8192]{0}', space=vmem, size = 0x2000, scoped, tag = 'output window, operand 0, single buffered']
    %9 = vsyncpa [#allocation5], 0
    %10 = vsyncpa [#allocation8], 0
    %11 = vsyncpa [#allocation6], 0
    // Predicated region
    $region2: #{tpu_custom_call.1} parent=1 // pred_check
      _
    $region3: #{tpu_custom_call.1} parent=1 // pred_check_branch
      %13 = sbr.rel (0) target = $region5
    $region4: #{tpu_custom_call.1} parent=1 // pred_region
      %s15 = ssub.s32 128, 128
      %16 = vsyncadd [#allocation5], %s15
      %s18 = sshll.u32 [#allocation4], 4
      %s19 = int_to_ptr.vmem [resolvable:$true] %s18
      %21 = dma.hbm_to_vmem [thread:$0]  %s0, 128, %s19, [#allocation5]
    $region5: #{tpu_custom_call.1} parent=1 // pred_fallthru
      _
    // Predicated region
    $region6: #{tpu_custom_call.1} parent=1 // pred_check
      _
    $region7: #{tpu_custom_call.1} parent=1 // pred_check_branch
      %23 = sbr.rel (0) target = $region9
    $region8: #{tpu_custom_call.1} parent=1 // pred_region
      %s25 = ssub.s32 128, 128
      %26 = vsyncadd [#allocation8], %s25
      %s28 = sshll.u32 [#allocation7], 4
      %s29 = int_to_ptr.vmem [resolvable:$true] %s28
      %31 = dma.hbm_to_vmem [thread:$0]  %s1, 128, %s29, [#allocation8]
    $region9: #{tpu_custom_call.1} parent=1 // pred_fallthru
      _
    // Predicated region
    $region10: #{tpu_custom_call.1} parent=1 // pred_check
      _
    $region11: #{tpu_custom_call.1} parent=1 // pred_check_branch
      %33 = sbr.rel (0) target = $region13
    $region12: #{tpu_custom_call.1} parent=1 // pred_region
      %s35 = ssub.s32 512, 512
      %36 = vsyncadd [#allocation8], %s35
      %s37 = sshll.u32 [#allocation9], 4
      %s38 = int_to_ptr.vmem [resolvable:$true] %s37
      %43 = dma.hbm_to_vmem [thread:$0]  %s3, 512, %s38, [#allocation8], 128, 128, 8
    $region13: #{tpu_custom_call.1} parent=1 // pred_fallthru
      _
    // Predicated region
    $region14: #{tpu_custom_call.1} parent=1 // pred_check
      _
    $region15: #{tpu_custom_call.1} parent=1 // pred_check_branch
      %45 = sbr.rel (0) target = $region17
    $region16: #{tpu_custom_call.1} parent=1 // pred_region
      %46 = dma.done [#allocation5], 128
    $region17: #{tpu_custom_call.1} parent=1 // pred_fallthru
      _
    // Predicated region
    $region18: #{tpu_custom_call.1} parent=1 // pred_check
      _
    $region19: #{tpu_custom_call.1} parent=1 // pred_check_branch
      %48 = sbr.rel (0) target = $region21
    $region20: #{tpu_custom_call.1} parent=1 // pred_region
      %49 = dma.done [#allocation8], 128
    $region21: #{tpu_custom_call.1} parent=1 // pred_fallthru
      _
    // Predicated region
    $region22: #{tpu_custom_call.1} parent=1 // pred_check
      _
    $region23: #{tpu_custom_call.1} parent=1 // pred_check_branch
      %51 = sbr.rel (0) target = $region25
    $region24: #{tpu_custom_call.1} parent=1 // pred_region
      %52 = dma.done [#allocation8], 512
    $region25: #{tpu_custom_call.1} parent=1 // pred_fallthru
      _
    // Predicated region
    $region26: #{tpu_custom_call.1} parent=1 // pred_check
      _
    $region27: #{tpu_custom_call.1} parent=1 // pred_check_branch
      %55 = sbr.rel target = $region29
    $region28: #{tpu_custom_call.1} parent=1 // pred_region
      %56 = sst [smem:[#allocation13]] [#allocation12]
      %57 = sst [smem:[#allocation14]] [#allocation11]
    $region29: #{tpu_custom_call.1} parent=1 // pred_fallthru
      _
    %59 = shalt.err (0)
    %s61 = sshll.u32 [#allocation2], 4
    %s62 = int_to_ptr.vmem [resolvable:$true] %s61
    %64 = dma.hbm_to_vmem [thread:$0]  %s2, 1024, %s62, [#allocation3]
    %s65 = scalar_lea.hbm %s2, 1024
    %s66 = scalar_lea.vmem [#allocation2], 64
    %s67 = scalar_lea.sflag [#allocation3], 1
    // Predicated region
    $region30: #{tpu_custom_call.1} parent=1 // pred_check
      _
    $region31: #{tpu_custom_call.1} parent=1 // pred_check_branch
      %69 = sbr.rel target = $region33
    $region32: #{tpu_custom_call.1} parent=1 // pred_region
      %70 = sst [smem:[#allocation13]] [#allocation16]
      %71 = sst [smem:[#allocation14]] [#allocation15]
    $region33: #{tpu_custom_call.1} parent=1 // pred_fallthru
      _
    %73 = shalt.err (0)
    %s75 = sshll.u32 %s66, 4
    %s76 = int_to_ptr.vmem [resolvable:$true] %s75
    %78 = dma.hbm_to_vmem [thread:$0]  %s65, 1024, %s76, %s67
    %s79 = scalar_lea.hbm %s2, 2048
    %s80 = scalar_lea.vmem [#allocation2], 128
    %s81 = scalar_lea.sflag [#allocation3], 2
    // Predicated region
    $region34: #{tpu_custom_call.1} parent=1 // pred_check
      _
    $region35: #{tpu_custom_call.1} parent=1 // pred_check_branch
      %83 = sbr.rel target = $region37
    $region36: #{tpu_custom_call.1} parent=1 // pred_region
      %84 = sst [smem:[#allocation13]] [#allocation18]
      %85 = sst [smem:[#allocation14]] [#allocation17]
    $region37: #{tpu_custom_call.1} parent=1 // pred_fallthru
      _
    %87 = shalt.err (0)
    %s89 = sshll.u32 %s80, 4
    %s90 = int_to_ptr.vmem [resolvable:$true] %s89
    %92 = dma.hbm_to_vmem [thread:$0]  %s79, 1024, %s90, %s81
    %s93 = scalar_lea.hbm %s2, 3072
    %s94 = scalar_lea.vmem [#allocation2], 192
    %s95 = scalar_lea.sflag [#allocation3], 3
    // Predicated region
    $region38: #{tpu_custom_call.1} parent=1 // pred_check
      _
    $region39: #{tpu_custom_call.1} parent=1 // pred_check_branch
      %97 = sbr.rel target = $region41
    $region40: #{tpu_custom_call.1} parent=1 // pred_region
      %98 = sst [smem:[#allocation13]] [#allocation20]
      %99 = sst [smem:[#allocation14]] [#allocation19]
    $region41: #{tpu_custom_call.1} parent=1 // pred_fallthru
      _
    %101 = shalt.err (0)
    %s103 = sshll.u32 %s94, 4
    %s104 = int_to_ptr.vmem [resolvable:$true] %s103
    %106 = dma.hbm_to_vmem [thread:$0]  %s93, 1024, %s104, %s95
    %s107 = scalar_lea.hbm %s2, 4096
    %s108 = scalar_lea.vmem [#allocation2], 256
    %s109 = scalar_lea.sflag [#allocation3], 4
    // Predicated region
    $region42: #{tpu_custom_call.1} parent=1 // pred_check
      _
    $region43: #{tpu_custom_call.1} parent=1 // pred_check_branch
      %111 = sbr.rel target = $region45
    $region44: #{tpu_custom_call.1} parent=1 // pred_region
      %112 = sst [smem:[#allocation13]] [#allocation22]
      %113 = sst [smem:[#allocation14]] [#allocation21]
    $region45: #{tpu_custom_call.1} parent=1 // pred_fallthru
      _
    %115 = shalt.err (0)
    %s117 = sshll.u32 %s108, 4
    %s118 = int_to_ptr.vmem [resolvable:$true] %s117
    %120 = dma.hbm_to_vmem [thread:$0]  %s107, 1024, %s118, %s109
    %s121 = scalar_lea.hbm %s2, 5120
    %s122 = scalar_lea.vmem [#allocation2], 320
    %s123 = scalar_lea.sflag [#allocation3], 5
    // Predicated region
    $region46: #{tpu_custom_call.1} parent=1 // pred_check
      _
    $region47: #{tpu_custom_call.1} parent=1 // pred_check_branch
      %125 = sbr.rel target = $region49
    $region48: #{tpu_custom_call.1} parent=1 // pred_region
      %126 = sst [smem:[#allocation13]] [#allocation24]
      %127 = sst [smem:[#allocation14]] [#allocation23]
    $region49: #{tpu_custom_call.1} parent=1 // pred_fallthru
      _
    %129 = shalt.err (0)
    %s131 = sshll.u32 %s122, 4
    %s132 = int_to_ptr.vmem [resolvable:$true] %s131
    %134 = dma.hbm_to_vmem [thread:$0]  %s121, 1024, %s132, %s123
    %s135 = scalar_lea.hbm %s2, 6144
    %s136 = scalar_lea.vmem [#allocation2], 384
    %s137 = scalar_lea.sflag [#allocation3], 6
    // Predicated region
    $region50: #{tpu_custom_call.1} parent=1 // pred_check
      _
    $region51: #{tpu_custom_call.1} parent=1 // pred_check_branch
      %139 = sbr.rel target = $region53
    $region52: #{tpu_custom_call.1} parent=1 // pred_region
      %140 = sst [smem:[#allocation13]] [#allocation26]
      %141 = sst [smem:[#allocation14]] [#allocation25]
    $region53: #{tpu_custom_call.1} parent=1 // pred_fallthru
      _
    %143 = shalt.err (0)
    %s145 = sshll.u32 %s136, 4
    %s146 = int_to_ptr.vmem [resolvable:$true] %s145
    %148 = dma.hbm_to_vmem [thread:$0]  %s135, 1024, %s146, %s137
    %s149 = scalar_lea.hbm %s2, 7168
    %s150 = scalar_lea.vmem [#allocation2], 448
    %s151 = scalar_lea.sflag [#allocation3], 7
    // Predicated region
    $region54: #{tpu_custom_call.1} parent=1 // pred_check
      _
    $region55: #{tpu_custom_call.1} parent=1 // pred_check_branch
      %153 = sbr.rel target = $region57
    $region56: #{tpu_custom_call.1} parent=1 // pred_region
      %154 = sst [smem:[#allocation13]] [#allocation28]
      %155 = sst [smem:[#allocation14]] [#allocation27]
    $region57: #{tpu_custom_call.1} parent=1 // pred_fallthru
      _
    %157 = shalt.err (0)
    %s159 = sshll.u32 %s150, 4
    %s160 = int_to_ptr.vmem [resolvable:$true] %s159
    %162 = dma.hbm_to_vmem [thread:$0]  %s149, 1024, %s160, %s151
    %s163 = scalar_lea.hbm %s2, 8192
    %s164 = scalar_lea.vmem [#allocation2], 512
    %s165 = scalar_lea.sflag [#allocation3], 8
    // Predicated region
    $region58: #{tpu_custom_call.1} parent=1 // pred_check
      _
    $region59: #{tpu_custom_call.1} parent=1 // pred_check_branch
      %167 = sbr.rel target = $region61
    $region60: #{tpu_custom_call.1} parent=1 // pred_region
      %168 = sst [smem:[#allocation13]] [#allocation30]
      %169 = sst [smem:[#allocation14]] [#allocation29]
    $region61: #{tpu_custom_call.1} parent=1 // pred_fallthru
      _
    %171 = shalt.err (0)
    %s173 = sshll.u32 %s164, 4
    %s174 = int_to_ptr.vmem [resolvable:$true] %s173
    %176 = dma.hbm_to_vmem [thread:$0]  %s163, 1024, %s174, %s165
    %s177 = scalar_lea.hbm %s2, 9216
    %s178 = scalar_lea.vmem [#allocation2], 576
    %s179 = scalar_lea.sflag [#allocation3], 9
    // Predicated region
    $region62: #{tpu_custom_call.1} parent=1 // pred_check
      _
    $region63: #{tpu_custom_call.1} parent=1 // pred_check_branch
      %181 = sbr.rel target = $region65
    $region64: #{tpu_custom_call.1} parent=1 // pred_region
      %182 = sst [smem:[#allocation13]] [#allocation32]
      %183 = sst [smem:[#allocation14]] [#allocation31]
    $region65: #{tpu_custom_call.1} parent=1 // pred_fallthru
      _
    %185 = shalt.err (0)
    %s187 = sshll.u32 %s178, 4
    %s188 = int_to_ptr.vmem [resolvable:$true] %s187
    %190 = dma.hbm_to_vmem [thread:$0]  %s177, 1024, %s188, %s179
    %v191 = vld [vmem:[#allocation4] sm:$0xff]
    %s192 = smul.u32 4, 16
    %s193 = smul.u32 %s192, 1
    %s194 = sshll.u32 %s193, 4
    %195 = dma.done [#allocation3], %s194
    %v196 = vpack.c.bf16 %v191, %v191
    %v197 = vld [vmem:[#allocation2] sm:$0xff]
    %v198 = vld [vmem:[#allocation2 + $0x8] sm:$0xff]
    %v199 = vld [vmem:[#allocation2 + $0x10] sm:$0xff]
    %v200 = vld [vmem:[#allocation2 + $0x18] sm:$0xff]
    %v201 = vld [vmem:[#allocation2 + $0x20] sm:$0xff]
    %v202 = vld [vmem:[#allocation2 + $0x28] sm:$0xff]
    %v203 = vld [vmem:[#allocation2 + $0x30] sm:$0xff]
    %v204 = vld [vmem:[#allocation2 + $0x38] sm:$0xff]
    %v205 = vld [vmem:[#allocation9] sm:$0x1]
    %v206 = vlaneseq
    %v207 = vshrl.u32 %v206, 7
    %v208 = vsub.s32 0, %v207
    %v209 = vrot.slane %v205, %v208
    %210 = vmatprep.subr.bf16.mxu0 0
    %211 = vmatpush1.bf16.msra.mxu0 %v197
    %212 = vmatprep.subr.bf16.mxu0 0
    %213 = vmatpush1.bf16.msra.mxu0 %v198
    %214 = vmatprep.subr.bf16.mxu0 0
    %215 = vmatpush1.bf16.msra.mxu0 %v199
    %216 = vmatprep.subr.bf16.mxu0 0
    %217 = vmatpush1.bf16.msra.mxu0 %v200
    %218 = vmatprep.subr.bf16.mxu0 0
    %219 = vmatpush1.bf16.msra.mxu0 %v201
    %220 = vmatprep.subr.bf16.mxu0 0
    %221 = vmatpush1.bf16.msra.mxu0 %v202
    %222 = vmatprep.subr.bf16.mxu0 0
    %223 = vmatpush1.bf16.msra.mxu0 %v203
    %224 = vmatprep.subr.bf16.mxu0 0
    %225 = vmatpush1.bf16.msra.mxu0 %v204
    %226 = vmatprep.subr.bf16.mxu0 0
    %227 = vmatpush1.bf16.msra.mxu0 0
    %228 = vmatprep.subr.bf16.mxu0 0
    %229 = vmatpush1.bf16.msra.mxu0 0
    %230 = vmatprep.subr.bf16.mxu0 0
    %231 = vmatpush1.bf16.msra.mxu0 0
    %232 = vmatprep.subr.bf16.mxu0 0
    %233 = vmatpush1.bf16.msra.mxu0 0
    %234 = vmatprep.subr.bf16.mxu0 0
    %235 = vmatpush1.bf16.msra.mxu0 0
    %236 = vmatprep.subr.bf16.mxu0 0
    %237 = vmatpush1.bf16.msra.mxu0 0
    %238 = vmatprep.subr.bf16.mxu0 0
    %239 = vmatpush1.bf16.msra.mxu0 0
    %240 = vmatprep.subr.bf16.mxu0 0
    %241 = vmatpush1.bf16.msra.mxu0 0
    %242 = vmatprep.mubr.bf16.mxu0 0
    %243 = vmatmul.mubr.bf16.gmra.mrb[0].mxu0 %v196
    %v244 = vpop.f32.mrb[0].mxu0
    %v245 = vadd.f32 %v209, %v244
    %v246 = vpop.f32.mrb[0].mxu0
    %v247 = vpop.f32.mrb[0].mxu0
    %v248 = vpop.f32.mrb[0].mxu0
    %249 = vdwg.mxu0
    %v250 = vld [vmem:[#allocation9 + $0xa] sm:$0x1]
    %v251 = vld [vmem:[#allocation9 + $0xb] sm:$0x1]
    %v252 = vrot.slane %v245, 4
    %v253 = vadd.f32 %v245, %v252
    %v254 = vrot.slane %v253, 2
    %v255 = vadd.f32 %v253, %v254
    %v256 = vrot.slane %v255, 1
    %v257 = vadd.f32 %v255, %v256
    %v258 = vrcp.pop 8.0
    %v259 = vmul.f32 %v257, %v258
    %v260 = vmul.f32 %v245, %v245
    %v261 = vrot.slane %v260, 4
    %v262 = vadd.f32 %v260, %v261
    %v263 = vrot.slane %v262, 2
    %v264 = vadd.f32 %v262, %v263
    %v265 = vrot.slane %v264, 1
    %v266 = vadd.f32 %v264, %v265
    %v267 = vmul.f32 %v266, %v258
    %v268 = vmul.f32 %v259, %v259
    %v269 = vsub.f32 %v267, %v268
    %v270 = vmax.f32 %v269, 0.0
    %v271 = vadd.f32 %v270, 1e-05
    %v272 = vrsqrt.pop %v271
    %v273 = vmul.f32 %v250, %v272
    %v274 = vsub.f32 %v245, %v259
    %v275 = vlaneseq
    %v276 = vshrl.u32 %v275, 7
    %v277 = vsub.s32 0, %v276
    %v278 = vrot.slane %v273, %v277
    %v279 = vmul.f32 %v274, %v278
    %v280 = vlaneseq
    %v281 = vshrl.u32 %v280, 7
    %v282 = vsub.s32 0, %v281
    %v283 = vrot.slane %v251, %v282
    %v284 = vadd.f32 %v279, %v283
    %v285 = vmax.f32 %v284, 0.0
    %s286 = sshll.u32 %s193, 4
    %287 = dma.done %s67, %s286
    %v288 = vpack.c.bf16 %v285, %v285
    %v289 = vld [vmem:[%s66] sm:$0xff]
    %v290 = vld [vmem:[%s66 + $0x8] sm:$0xff]
    %v291 = vld [vmem:[%s66 + $0x10] sm:$0xff]
    %v292 = vld [vmem:[%s66 + $0x18] sm:$0xff]
    %v293 = vld [vmem:[%s66 + $0x20] sm:$0xff]
    %v294 = vld [vmem:[%s66 + $0x28] sm:$0xff]
    %v295 = vld [vmem:[%s66 + $0x30] sm:$0xff]
    %v296 = vld [vmem:[%s66 + $0x38] sm:$0xff]
    %v297 = vld [vmem:[#allocation9 + $0x1] sm:$0x1]
    %v298 = vlaneseq
    %v299 = vshrl.u32 %v298, 7
    %v300 = vsub.s32 0, %v299
    %v301 = vrot.slane %v297, %v300
    %302 = vmatprep.subr.bf16.mxu0 0
    %303 = vmatpush1.bf16.msra.mxu0 %v289
    %304 = vmatprep.subr.bf16.mxu0 0
    %305 = vmatpush1.bf16.msra.mxu0 %v290
    %306 = vmatprep.subr.bf16.mxu0 0
    %307 = vmatpush1.bf16.msra.mxu0 %v291
    %308 = vmatprep.subr.bf16.mxu0 0
    %309 = vmatpush1.bf16.msra.mxu0 %v292
    %310 = vmatprep.subr.bf16.mxu0 0
    %311 = vmatpush1.bf16.msra.mxu0 %v293
    %312 = vmatprep.subr.bf16.mxu0 0
    %313 = vmatpush1.bf16.msra.mxu0 %v294
    %314 = vmatprep.subr.bf16.mxu0 0
    %315 = vmatpush1.bf16.msra.mxu0 %v295
    %316 = vmatprep.subr.bf16.mxu0 0
    %317 = vmatpush1.bf16.msra.mxu0 %v296
    %318 = vmatprep.subr.bf16.mxu0 0
    %319 = vmatpush1.bf16.msra.mxu0 0
    %320 = vmatprep.subr.bf16.mxu0 0
    %321 = vmatpush1.bf16.msra.mxu0 0
    %322 = vmatprep.subr.bf16.mxu0 0
    %323 = vmatpush1.bf16.msra.mxu0 0
    %324 = vmatprep.subr.bf16.mxu0 0
    %325 = vmatpush1.bf16.msra.mxu0 0
    %326 = vmatprep.subr.bf16.mxu0 0
    %327 = vmatpush1.bf16.msra.mxu0 0
    %328 = vmatprep.subr.bf16.mxu0 0
    %329 = vmatpush1.bf16.msra.mxu0 0
    %330 = vmatprep.subr.bf16.mxu0 0
    %331 = vmatpush1.bf16.msra.mxu0 0
    %332 = vmatprep.subr.bf16.mxu0 0
    %333 = vmatpush1.bf16.msra.mxu0 0
    %334 = vmatprep.mubr.bf16.mxu0 0
    %335 = vmatmul.mubr.bf16.gmra.mrb[0].mxu0 %v288
    %v336 = vpop.f32.mrb[0].mxu0
    %v337 = vadd.f32 %v301, %v336
    %v338 = vpop.f32.mrb[0].mxu0
    %v339 = vpop.f32.mrb[0].mxu0
    %v340 = vpop.f32.mrb[0].mxu0
    %341 = vdwg.mxu0
    %v342 = vld [vmem:[#allocation9 + $0xc] sm:$0x1]
    %v343 = vld [vmem:[#allocation9 + $0xd] sm:$0x1]
    %v344 = vrot.slane %v337, 4
    %v345 = vadd.f32 %v337, %v344
    %v346 = vrot.slane %v345, 2
    %v347 = vadd.f32 %v345, %v346
    %v348 = vrot.slane %v347, 1
    %v349 = vadd.f32 %v347, %v348
    %v350 = vmul.f32 %v349, %v258
    %v351 = vmul.f32 %v337, %v337
    %v352 = vrot.slane %v351, 4
    %v353 = vadd.f32 %v351, %v352
    %v354 = vrot.slane %v353, 2
    %v355 = vadd.f32 %v353, %v354
    %v356 = vrot.slane %v355, 1
    %v357 = vadd.f32 %v355, %v356
    %v358 = vmul.f32 %v357, %v258
    %v359 = vmul.f32 %v350, %v350
    %v360 = vsub.f32 %v358, %v359
    %v361 = vmax.f32 %v360, 0.0
    %v362 = vadd.f32 %v361, 1e-05
    %v363 = vrsqrt.pop %v362
    %v364 = vmul.f32 %v342, %v363
    %v365 = vsub.f32 %v337, %v350
    %v366 = vlaneseq
    %v367 = vshrl.u32 %v366, 7
    %v368 = vsub.s32 0, %v367
    %v369 = vrot.slane %v364, %v368
    %v370 = vmul.f32 %v365, %v369
    %v371 = vlaneseq
    %v372 = vshrl.u32 %v371, 7
    %v373 = vsub.s32 0, %v372
    %v374 = vrot.slane %v343, %v373
    %v375 = vadd.f32 %v370, %v374
    %v376 = vmax.f32 %v375, 0.0
    %s377 = sshll.u32 %s193, 4
    %378 = dma.done %s81, %s377
    %v379 = vpack.c.bf16 %v376, %v376
    %v380 = vld [vmem:[%s80] sm:$0xff]
    %v381 = vld [vmem:[%s80 + $0x8] sm:$0xff]
    %v382 = vld [vmem:[%s80 + $0x10] sm:$0xff]
    %v383 = vld [vmem:[%s80 + $0x18] sm:$0xff]
    %v384 = vld [vmem:[%s80 + $0x20] sm:$0xff]
    %v385 = vld [vmem:[%s80 + $0x28] sm:$0xff]
    %v386 = vld [vmem:[%s80 + $0x30] sm:$0xff]
    %v387 = vld [vmem:[%s80 + $0x38] sm:$0xff]
    %v388 = vld [vmem:[#allocation9 + $0x2] sm:$0x1]
    %v389 = vlaneseq
    %v390 = vshrl.u32 %v389, 7
    %v391 = vsub.s32 0, %v390
    %v392 = vrot.slane %v388, %v391
    %393 = vmatprep.subr.bf16.mxu0 0
    %394 = vmatpush1.bf16.msra.mxu0 %v380
    %395 = vmatprep.subr.bf16.mxu0 0
    %396 = vmatpush1.bf16.msra.mxu0 %v381
    %397 = vmatprep.subr.bf16.mxu0 0
    %398 = vmatpush1.bf16.msra.mxu0 %v382
    %399 = vmatprep.subr.bf16.mxu0 0
    %400 = vmatpush1.bf16.msra.mxu0 %v383
    %401 = vmatprep.subr.bf16.mxu0 0
    %402 = vmatpush1.bf16.msra.mxu0 %v384
    %403 = vmatprep.subr.bf16.mxu0 0
    %404 = vmatpush1.bf16.msra.mxu0 %v385
    %405 = vmatprep.subr.bf16.mxu0 0
    %406 = vmatpush1.bf16.msra.mxu0 %v386
    %407 = vmatprep.subr.bf16.mxu0 0
    %408 = vmatpush1.bf16.msra.mxu0 %v387
    %409 = vmatprep.subr.bf16.mxu0 0
    %410 = vmatpush1.bf16.msra.mxu0 0
    %411 = vmatprep.subr.bf16.mxu0 0
    %412 = vmatpush1.bf16.msra.mxu0 0
    %413 = vmatprep.subr.bf16.mxu0 0
    %414 = vmatpush1.bf16.msra.mxu0 0
    %415 = vmatprep.subr.bf16.mxu0 0
    %416 = vmatpush1.bf16.msra.mxu0 0
    %417 = vmatprep.subr.bf16.mxu0 0
    %418 = vmatpush1.bf16.msra.mxu0 0
    %419 = vmatprep.subr.bf16.mxu0 0
    %420 = vmatpush1.bf16.msra.mxu0 0
    %421 = vmatprep.subr.bf16.mxu0 0
    %422 = vmatpush1.bf16.msra.mxu0 0
    %423 = vmatprep.subr.bf16.mxu0 0
    %424 = vmatpush1.bf16.msra.mxu0 0
    %425 = vmatprep.mubr.bf16.mxu0 0
    %426 = vmatmul.mubr.bf16.gmra.mrb[0].mxu0 %v379
    %v427 = vpop.f32.mrb[0].mxu0
    %v428 = vadd.f32 %v392, %v427
    %v429 = vpop.f32.mrb[0].mxu0
    %v430 = vpop.f32.mrb[0].mxu0
    %v431 = vpop.f32.mrb[0].mxu0
    %432 = vdwg.mxu0
    %v433 = vld [vmem:[#allocation9 + $0xe] sm:$0x1]
    %v434 = vld [vmem:[#allocation9 + $0xf] sm:$0x1]
    %v435 = vrot.slane %v428, 4
    %v436 = vadd.f32 %v428, %v435
    %v437 = vrot.slane %v436, 2
    %v438 = vadd.f32 %v436, %v437
    %v439 = vrot.slane %v438, 1
    %v440 = vadd.f32 %v438, %v439
    %v441 = vmul.f32 %v440, %v258
    %v442 = vmul.f32 %v428, %v428
    %v443 = vrot.slane %v442, 4
    %v444 = vadd.f32 %v442, %v443
    %v445 = vrot.slane %v444, 2
    %v446 = vadd.f32 %v444, %v445
    %v447 = vrot.slane %v446, 1
    %v448 = vadd.f32 %v446, %v447
    %v449 = vmul.f32 %v448, %v258
    %v450 = vmul.f32 %v441, %v441
    %v451 = vsub.f32 %v449, %v450
    %v452 = vmax.f32 %v451, 0.0
    %v453 = vadd.f32 %v452, 1e-05
    %v454 = vrsqrt.pop %v453
    %v455 = vmul.f32 %v433, %v454
    %v456 = vsub.f32 %v428, %v441
    %v457 = vlaneseq
    %v458 = vshrl.u32 %v457, 7
    %v459 = vsub.s32 0, %v458
    %v460 = vrot.slane %v455, %v459
    %v461 = vmul.f32 %v456, %v460
    %v462 = vlaneseq
    %v463 = vshrl.u32 %v462, 7
    %v464 = vsub.s32 0, %v463
    %v465 = vrot.slane %v434, %v464
    %v466 = vadd.f32 %v461, %v465
    %v467 = vmax.f32 %v466, 0.0
    %s468 = sshll.u32 %s193, 4
    %469 = dma.done %s95, %s468
    %v470 = vpack.c.bf16 %v467, %v467
    %v471 = vld [vmem:[%s94] sm:$0xff]
    %v472 = vld [vmem:[%s94 + $0x8] sm:$0xff]
    %v473 = vld [vmem:[%s94 + $0x10] sm:$0xff]
    %v474 = vld [vmem:[%s94 + $0x18] sm:$0xff]
    %v475 = vld [vmem:[%s94 + $0x20] sm:$0xff]
    %v476 = vld [vmem:[%s94 + $0x28] sm:$0xff]
    %v477 = vld [vmem:[%s94 + $0x30] sm:$0xff]
    %v478 = vld [vmem:[%s94 + $0x38] sm:$0xff]
    %v479 = vld [vmem:[#allocation9 + $0x3] sm:$0x1]
    %v480 = vlaneseq
    %v481 = vshrl.u32 %v480, 7
    %v482 = vsub.s32 0, %v481
    %v483 = vrot.slane %v479, %v482
    %484 = vmatprep.subr.bf16.mxu0 0
    %485 = vmatpush1.bf16.msra.mxu0 %v471
    %486 = vmatprep.subr.bf16.mxu0 0
    %487 = vmatpush1.bf16.msra.mxu0 %v472
    %488 = vmatprep.subr.bf16.mxu0 0
    %489 = vmatpush1.bf16.msra.mxu0 %v473
    %490 = vmatprep.subr.bf16.mxu0 0
    %491 = vmatpush1.bf16.msra.mxu0 %v474
    %492 = vmatprep.subr.bf16.mxu0 0
    %493 = vmatpush1.bf16.msra.mxu0 %v475
    %494 = vmatprep.subr.bf16.mxu0 0
    %495 = vmatpush1.bf16.msra.mxu0 %v476
    %496 = vmatprep.subr.bf16.mxu0 0
    %497 = vmatpush1.bf16.msra.mxu0 %v477
    %498 = vmatprep.subr.bf16.mxu0 0
    %499 = vmatpush1.bf16.msra.mxu0 %v478
    %500 = vmatprep.subr.bf16.mxu0 0
    %501 = vmatpush1.bf16.msra.mxu0 0
    %502 = vmatprep.subr.bf16.mxu0 0
    %503 = vmatpush1.bf16.msra.mxu0 0
    %504 = vmatprep.subr.bf16.mxu0 0
    %505 = vmatpush1.bf16.msra.mxu0 0
    %506 = vmatprep.subr.bf16.mxu0 0
    %507 = vmatpush1.bf16.msra.mxu0 0
    %508 = vmatprep.subr.bf16.mxu0 0
    %509 = vmatpush1.bf16.msra.mxu0 0
    %510 = vmatprep.subr.bf16.mxu0 0
    %511 = vmatpush1.bf16.msra.mxu0 0
    %512 = vmatprep.subr.bf16.mxu0 0
    %513 = vmatpush1.bf16.msra.mxu0 0
    %514 = vmatprep.subr.bf16.mxu0 0
    %515 = vmatpush1.bf16.msra.mxu0 0
    %516 = vmatprep.mubr.bf16.mxu0 0
    %517 = vmatmul.mubr.bf16.gmra.mrb[0].mxu0 %v470
    %v518 = vpop.f32.mrb[0].mxu0
    %v519 = vadd.f32 %v483, %v518
    %v520 = vpop.f32.mrb[0].mxu0
    %v521 = vpop.f32.mrb[0].mxu0
    %v522 = vpop.f32.mrb[0].mxu0
    %523 = vdwg.mxu0
    %v524 = vld [vmem:[#allocation9 + $0x10] sm:$0x1]
    %v525 = vld [vmem:[#allocation9 + $0x11] sm:$0x1]
    %v526 = vrot.slane %v519, 4
    %v527 = vadd.f32 %v519, %v526
    %v528 = vrot.slane %v527, 2
    %v529 = vadd.f32 %v527, %v528
    %v530 = vrot.slane %v529, 1
    %v531 = vadd.f32 %v529, %v530
    %v532 = vmul.f32 %v531, %v258
    %v533 = vmul.f32 %v519, %v519
    %v534 = vrot.slane %v533, 4
    %v535 = vadd.f32 %v533, %v534
    %v536 = vrot.slane %v535, 2
    %v537 = vadd.f32 %v535, %v536
    %v538 = vrot.slane %v537, 1
    %v539 = vadd.f32 %v537, %v538
    %v540 = vmul.f32 %v539, %v258
    %v541 = vmul.f32 %v532, %v532
    %v542 = vsub.f32 %v540, %v541
    %v543 = vmax.f32 %v542, 0.0
    %v544 = vadd.f32 %v543, 1e-05
    %v545 = vrsqrt.pop %v544
    %v546 = vmul.f32 %v524, %v545
    %v547 = vsub.f32 %v519, %v532
    %v548 = vlaneseq
    %v549 = vshrl.u32 %v548, 7
    %v550 = vsub.s32 0, %v549
    %v551 = vrot.slane %v546, %v550
    %v552 = vmul.f32 %v547, %v551
    %v553 = vlaneseq
    %v554 = vshrl.u32 %v553, 7
    %v555 = vsub.s32 0, %v554
    %v556 = vrot.slane %v525, %v555
    %v557 = vadd.f32 %v552, %v556
    %v558 = vmax.f32 %v557, 0.0
    %s559 = sshll.u32 %s193, 4
    %560 = dma.done %s109, %s559
    %v561 = vpack.c.bf16 %v558, %v558
    %v562 = vld [vmem:[%s108] sm:$0xff]
    %v563 = vld [vmem:[%s108 + $0x8] sm:$0xff]
    %v564 = vld [vmem:[%s108 + $0x10] sm:$0xff]
    %v565 = vld [vmem:[%s108 + $0x18] sm:$0xff]
    %v566 = vld [vmem:[%s108 + $0x20] sm:$0xff]
    %v567 = vld [vmem:[%s108 + $0x28] sm:$0xff]
    %v568 = vld [vmem:[%s108 + $0x30] sm:$0xff]
    %v569 = vld [vmem:[%s108 + $0x38] sm:$0xff]
    %v570 = vld [vmem:[#allocation9 + $0x4] sm:$0x1]
    %v571 = vlaneseq
    %v572 = vshrl.u32 %v571, 7
    %v573 = vsub.s32 0, %v572
    %v574 = vrot.slane %v570, %v573
    %575 = vmatprep.subr.bf16.mxu0 0
    %576 = vmatpush1.bf16.msra.mxu0 %v562
    %577 = vmatprep.subr.bf16.mxu0 0
    %578 = vmatpush1.bf16.msra.mxu0 %v563
    %579 = vmatprep.subr.bf16.mxu0 0
    %580 = vmatpush1.bf16.msra.mxu0 %v564
    %581 = vmatprep.subr.bf16.mxu0 0
    %582 = vmatpush1.bf16.msra.mxu0 %v565
    %583 = vmatprep.subr.bf16.mxu0 0
    %584 = vmatpush1.bf16.msra.mxu0 %v566
    %585 = vmatprep.subr.bf16.mxu0 0
    %586 = vmatpush1.bf16.msra.mxu0 %v567
    %587 = vmatprep.subr.bf16.mxu0 0
    %588 = vmatpush1.bf16.msra.mxu0 %v568
    %589 = vmatprep.subr.bf16.mxu0 0
    %590 = vmatpush1.bf16.msra.mxu0 %v569
    %591 = vmatprep.subr.bf16.mxu0 0
    %592 = vmatpush1.bf16.msra.mxu0 0
    %593 = vmatprep.subr.bf16.mxu0 0
    %594 = vmatpush1.bf16.msra.mxu0 0
    %595 = vmatprep.subr.bf16.mxu0 0
    %596 = vmatpush1.bf16.msra.mxu0 0
    %597 = vmatprep.subr.bf16.mxu0 0
    %598 = vmatpush1.bf16.msra.mxu0 0
    %599 = vmatprep.subr.bf16.mxu0 0
    %600 = vmatpush1.bf16.msra.mxu0 0
    %601 = vmatprep.subr.bf16.mxu0 0
    %602 = vmatpush1.bf16.msra.mxu0 0
    %603 = vmatprep.subr.bf16.mxu0 0
    %604 = vmatpush1.bf16.msra.mxu0 0
    %605 = vmatprep.subr.bf16.mxu0 0
    %606 = vmatpush1.bf16.msra.mxu0 0
    %607 = vmatprep.mubr.bf16.mxu0 0
    %608 = vmatmul.mubr.bf16.gmra.mrb[0].mxu0 %v561
    %v609 = vpop.f32.mrb[0].mxu0
    %v610 = vadd.f32 %v574, %v609
    %v611 = vpop.f32.mrb[0].mxu0
    %v612 = vpop.f32.mrb[0].mxu0
    %v613 = vpop.f32.mrb[0].mxu0
    %614 = vdwg.mxu0
    %v615 = vlaneseq
    %v616 = vand.u32 %v615, 127
    %vm617 = vcmp.lt.s32.totalorder %v616, 3
    %v618 = vsel %vm617, %v610, 0.0
    %v619 = vld [vmem:[#allocation7] sm:$0xff]
    %v620 = vmul.f32 %v610, 0.5
    %v621 = vmul.f32 %v620, 1.442695
    %v622 = vpow.pop %v621
    %v623 = vmul.f32 %v619, %v622
    %v624 = vadd.f32 %v618, %v623
    %s625 = sshll.u32 %s193, 4
    %626 = dma.done %s123, %s625
    %v627 = vpack.c.bf16 %v624, %v624
    %v628 = vld [vmem:[%s122] sm:$0xff]
    %v629 = vld [vmem:[%s122 + $0x8] sm:$0xff]
    %v630 = vld [vmem:[%s122 + $0x10] sm:$0xff]
    %v631 = vld [vmem:[%s122 + $0x18] sm:$0xff]
    %v632 = vld [vmem:[%s122 + $0x20] sm:$0xff]
    %v633 = vld [vmem:[%s122 + $0x28] sm:$0xff]
    %v634 = vld [vmem:[%s122 + $0x30] sm:$0xff]
    %v635 = vld [vmem:[%s122 + $0x38] sm:$0xff]
    %v636 = vld [vmem:[#allocation9 + $0x5] sm:$0x1]
    %v637 = vlaneseq
    %v638 = vshrl.u32 %v637, 7
    %v639 = vsub.s32 0, %v638
    %v640 = vrot.slane %v636, %v639
    %641 = vmatprep.subr.bf16.mxu0 0
    %642 = vmatpush1.bf16.msra.mxu0 %v628
    %643 = vmatprep.subr.bf16.mxu0 0
    %644 = vmatpush1.bf16.msra.mxu0 %v629
    %645 = vmatprep.subr.bf16.mxu0 0
    %646 = vmatpush1.bf16.msra.mxu0 %v630
    %647 = vmatprep.subr.bf16.mxu0 0
    %648 = vmatpush1.bf16.msra.mxu0 %v631
    %649 = vmatprep.subr.bf16.mxu0 0
    %650 = vmatpush1.bf16.msra.mxu0 %v632
    %651 = vmatprep.subr.bf16.mxu0 0
    %652 = vmatpush1.bf16.msra.mxu0 %v633
    %653 = vmatprep.subr.bf16.mxu0 0
    %654 = vmatpush1.bf16.msra.mxu0 %v634
    %655 = vmatprep.subr.bf16.mxu0 0
    %656 = vmatpush1.bf16.msra.mxu0 %v635
    %657 = vmatprep.subr.bf16.mxu0 0
    %658 = vmatpush1.bf16.msra.mxu0 0
    %659 = vmatprep.subr.bf16.mxu0 0
    %660 = vmatpush1.bf16.msra.mxu0 0
    %661 = vmatprep.subr.bf16.mxu0 0
    %662 = vmatpush1.bf16.msra.mxu0 0
    %663 = vmatprep.subr.bf16.mxu0 0
    %664 = vmatpush1.bf16.msra.mxu0 0
    %665 = vmatprep.subr.bf16.mxu0 0
    %666 = vmatpush1.bf16.msra.mxu0 0
    %667 = vmatprep.subr.bf16.mxu0 0
    %668 = vmatpush1.bf16.msra.mxu0 0
    %669 = vmatprep.subr.bf16.mxu0 0
    %670 = vmatpush1.bf16.msra.mxu0 0
    %671 = vmatprep.subr.bf16.mxu0 0
    %672 = vmatpush1.bf16.msra.mxu0 0
    %673 = vmatprep.mubr.bf16.mxu0 0
    %674 = vmatmul.mubr.bf16.gmra.mrb[0].mxu0 %v627
    %v675 = vpop.f32.mrb[0].mxu0
    %v676 = vadd.f32 %v640, %v675
    %v677 = vpop.f32.mrb[0].mxu0
    %v678 = vpop.f32.mrb[0].mxu0
    %v679 = vpop.f32.mrb[0].mxu0
    %680 = vdwg.mxu0
    %v681 = vld [vmem:[#allocation9 + $0x12] sm:$0x1]
    %v682 = vld [vmem:[#allocation9 + $0x13] sm:$0x1]
    %v683 = vrot.slane %v676, 4
    %v684 = vadd.f32 %v676, %v683
    %v685 = vrot.slane %v684, 2
    %v686 = vadd.f32 %v684, %v685
    %v687 = vrot.slane %v686, 1
    %v688 = vadd.f32 %v686, %v687
    %v689 = vmul.f32 %v688, %v258
    %v690 = vmul.f32 %v676, %v676
    %v691 = vrot.slane %v690, 4
    %v692 = vadd.f32 %v690, %v691
    %v693 = vrot.slane %v692, 2
    %v694 = vadd.f32 %v692, %v693
    %v695 = vrot.slane %v694, 1
    %v696 = vadd.f32 %v694, %v695
    %v697 = vmul.f32 %v696, %v258
    %v698 = vmul.f32 %v689, %v689
    %v699 = vsub.f32 %v697, %v698
    %v700 = vmax.f32 %v699, 0.0
    %v701 = vadd.f32 %v700, 1e-05
    %v702 = vrsqrt.pop %v701
    %v703 = vmul.f32 %v681, %v702
    %v704 = vsub.f32 %v676, %v689
    %v705 = vlaneseq
    %v706 = vshrl.u32 %v705, 7
    %v707 = vsub.s32 0, %v706
    %v708 = vrot.slane %v703, %v707
    %v709 = vmul.f32 %v704, %v708
    %v710 = vlaneseq
    %v711 = vshrl.u32 %v710, 7
    %v712 = vsub.s32 0, %v711
    %v713 = vrot.slane %v682, %v712
    %v714 = vadd.f32 %v709, %v713
    %v715 = vmax.f32 %v714, 0.0
    %s716 = sshll.u32 %s193, 4
    %717 = dma.done %s137, %s716
    %v718 = vpack.c.bf16 %v715, %v715
    %v719 = vld [vmem:[%s136] sm:$0xff]
    %v720 = vld [vmem:[%s136 + $0x8] sm:$0xff]
    %v721 = vld [vmem:[%s136 + $0x10] sm:$0xff]
    %v722 = vld [vmem:[%s136 + $0x18] sm:$0xff]
    %v723 = vld [vmem:[%s136 + $0x20] sm:$0xff]
    %v724 = vld [vmem:[%s136 + $0x28] sm:$0xff]
    %v725 = vld [vmem:[%s136 + $0x30] sm:$0xff]
    %v726 = vld [vmem:[%s136 + $0x38] sm:$0xff]
    %v727 = vld [vmem:[#allocation9 + $0x6] sm:$0x1]
    %v728 = vlaneseq
    %v729 = vshrl.u32 %v728, 7
    %v730 = vsub.s32 0, %v729
    %v731 = vrot.slane %v727, %v730
    %732 = vmatprep.subr.bf16.mxu0 0
    %733 = vmatpush1.bf16.msra.mxu0 %v719
    %734 = vmatprep.subr.bf16.mxu0 0
    %735 = vmatpush1.bf16.msra.mxu0 %v720
    %736 = vmatprep.subr.bf16.mxu0 0
    %737 = vmatpush1.bf16.msra.mxu0 %v721
    %738 = vmatprep.subr.bf16.mxu0 0
    %739 = vmatpush1.bf16.msra.mxu0 %v722
    %740 = vmatprep.subr.bf16.mxu0 0
    %741 = vmatpush1.bf16.msra.mxu0 %v723
    %742 = vmatprep.subr.bf16.mxu0 0
    %743 = vmatpush1.bf16.msra.mxu0 %v724
    %744 = vmatprep.subr.bf16.mxu0 0
    %745 = vmatpush1.bf16.msra.mxu0 %v725
    %746 = vmatprep.subr.bf16.mxu0 0
    %747 = vmatpush1.bf16.msra.mxu0 %v726
    %748 = vmatprep.subr.bf16.mxu0 0
    %749 = vmatpush1.bf16.msra.mxu0 0
    %750 = vmatprep.subr.bf16.mxu0 0
    %751 = vmatpush1.bf16.msra.mxu0 0
    %752 = vmatprep.subr.bf16.mxu0 0
    %753 = vmatpush1.bf16.msra.mxu0 0
    %754 = vmatprep.subr.bf16.mxu0 0
    %755 = vmatpush1.bf16.msra.mxu0 0
    %756 = vmatprep.subr.bf16.mxu0 0
    %757 = vmatpush1.bf16.msra.mxu0 0
    %758 = vmatprep.subr.bf16.mxu0 0
    %759 = vmatpush1.bf16.msra.mxu0 0
    %760 = vmatprep.subr.bf16.mxu0 0
    %761 = vmatpush1.bf16.msra.mxu0 0
    %762 = vmatprep.subr.bf16.mxu0 0
    %763 = vmatpush1.bf16.msra.mxu0 0
    %764 = vmatprep.mubr.bf16.mxu0 0
    %765 = vmatmul.mubr.bf16.gmra.mrb[0].mxu0 %v718
    %v766 = vpop.f32.mrb[0].mxu0
    %v767 = vadd.f32 %v731, %v766
    %v768 = vpop.f32.mrb[0].mxu0
    %v769 = vpop.f32.mrb[0].mxu0
    %v770 = vpop.f32.mrb[0].mxu0
    %771 = vdwg.mxu0
    %v772 = vld [vmem:[#allocation9 + $0x14] sm:$0x1]
    %v773 = vld [vmem:[#allocation9 + $0x15] sm:$0x1]
    %v774 = vrot.slane %v767, 4
    %v775 = vadd.f32 %v767, %v774
    %v776 = vrot.slane %v775, 2
    %v777 = vadd.f32 %v775, %v776
    %v778 = vrot.slane %v777, 1
    %v779 = vadd.f32 %v777, %v778
    %v780 = vmul.f32 %v779, %v258
    %v781 = vmul.f32 %v767, %v767
    %v782 = vrot.slane %v781, 4
    %v783 = vadd.f32 %v781, %v782
    %v784 = vrot.slane %v783, 2
    %v785 = vadd.f32 %v783, %v784
    %v786 = vrot.slane %v785, 1
    %v787 = vadd.f32 %v785, %v786
    %v788 = vmul.f32 %v787, %v258
    %v789 = vmul.f32 %v780, %v780
    %v790 = vsub.f32 %v788, %v789
    %v791 = vmax.f32 %v790, 0.0
    %v792 = vadd.f32 %v791, 1e-05
    %v793 = vrsqrt.pop %v792
    %v794 = vmul.f32 %v772, %v793
    %v795 = vsub.f32 %v767, %v780
    %v796 = vlaneseq
    %v797 = vshrl.u32 %v796, 7
    %v798 = vsub.s32 0, %v797
    %v799 = vrot.slane %v794, %v798
    %v800 = vmul.f32 %v795, %v799
    %v801 = vlaneseq
    %v802 = vshrl.u32 %v801, 7
    %v803 = vsub.s32 0, %v802
    %v804 = vrot.slane %v773, %v803
    %v805 = vadd.f32 %v800, %v804
    %v806 = vmax.f32 %v805, 0.0
    %s807 = sshll.u32 %s193, 4
    %808 = dma.done %s151, %s807
    %v809 = vpack.c.bf16 %v806, %v806
    %v810 = vld [vmem:[%s150] sm:$0xff]
    %v811 = vld [vmem:[%s150 + $0x8] sm:$0xff]
    %v812 = vld [vmem:[%s150 + $0x10] sm:$0xff]
    %v813 = vld [vmem:[%s150 + $0x18] sm:$0xff]
    %v814 = vld [vmem:[%s150 + $0x20] sm:$0xff]
    %v815 = vld [vmem:[%s150 + $0x28] sm:$0xff]
    %v816 = vld [vmem:[%s150 + $0x30] sm:$0xff]
    %v817 = vld [vmem:[%s150 + $0x38] sm:$0xff]
    %v818 = vld [vmem:[#allocation9 + $0x7] sm:$0x1]
    %v819 = vlaneseq
    %v820 = vshrl.u32 %v819, 7
    %v821 = vsub.s32 0, %v820
    %v822 = vrot.slane %v818, %v821
    %823 = vmatprep.subr.bf16.mxu0 0
    %824 = vmatpush1.bf16.msra.mxu0 %v810
    %825 = vmatprep.subr.bf16.mxu0 0
    %826 = vmatpush1.bf16.msra.mxu0 %v811
    %827 = vmatprep.subr.bf16.mxu0 0
    %828 = vmatpush1.bf16.msra.mxu0 %v812
    %829 = vmatprep.subr.bf16.mxu0 0
    %830 = vmatpush1.bf16.msra.mxu0 %v813
    %831 = vmatprep.subr.bf16.mxu0 0
    %832 = vmatpush1.bf16.msra.mxu0 %v814
    %833 = vmatprep.subr.bf16.mxu0 0
    %834 = vmatpush1.bf16.msra.mxu0 %v815
    %835 = vmatprep.subr.bf16.mxu0 0
    %836 = vmatpush1.bf16.msra.mxu0 %v816
    %837 = vmatprep.subr.bf16.mxu0 0
    %838 = vmatpush1.bf16.msra.mxu0 %v817
    %839 = vmatprep.subr.bf16.mxu0 0
    %840 = vmatpush1.bf16.msra.mxu0 0
    %841 = vmatprep.subr.bf16.mxu0 0
    %842 = vmatpush1.bf16.msra.mxu0 0
    %843 = vmatprep.subr.bf16.mxu0 0
    %844 = vmatpush1.bf16.msra.mxu0 0
    %845 = vmatprep.subr.bf16.mxu0 0
    %846 = vmatpush1.bf16.msra.mxu0 0
    %847 = vmatprep.subr.bf16.mxu0 0
    %848 = vmatpush1.bf16.msra.mxu0 0
    %849 = vmatprep.subr.bf16.mxu0 0
    %850 = vmatpush1.bf16.msra.mxu0 0
    %851 = vmatprep.subr.bf16.mxu0 0
    %852 = vmatpush1.bf16.msra.mxu0 0
    %853 = vmatprep.subr.bf16.mxu0 0
    %854 = vmatpush1.bf16.msra.mxu0 0
    %855 = vmatprep.mubr.bf16.mxu0 0
    %856 = vmatmul.mubr.bf16.gmra.mrb[0].mxu0 %v809
    %v857 = vpop.f32.mrb[0].mxu0
    %v858 = vadd.f32 %v822, %v857
    %v859 = vpop.f32.mrb[0].mxu0
    %v860 = vpop.f32.mrb[0].mxu0
    %v861 = vpop.f32.mrb[0].mxu0
    %862 = vdwg.mxu0
    %v863 = vld [vmem:[#allocation9 + $0x16] sm:$0x1]
    %v864 = vld [vmem:[#allocation9 + $0x17] sm:$0x1]
    %v865 = vrot.slane %v858, 4
    %v866 = vadd.f32 %v858, %v865
    %v867 = vrot.slane %v866, 2
    %v868 = vadd.f32 %v866, %v867
    %v869 = vrot.slane %v868, 1
    %v870 = vadd.f32 %v868, %v869
    %v871 = vmul.f32 %v870, %v258
    %v872 = vmul.f32 %v858, %v858
    %v873 = vrot.slane %v872, 4
    %v874 = vadd.f32 %v872, %v873
    %v875 = vrot.slane %v874, 2
    %v876 = vadd.f32 %v874, %v875
    %v877 = vrot.slane %v876, 1
    %v878 = vadd.f32 %v876, %v877
    %v879 = vmul.f32 %v878, %v258
    %v880 = vmul.f32 %v871, %v871
    %v881 = vsub.f32 %v879, %v880
    %v882 = vmax.f32 %v881, 0.0
    %v883 = vadd.f32 %v882, 1e-05
    %v884 = vrsqrt.pop %v883
    %v885 = vmul.f32 %v863, %v884
    %v886 = vsub.f32 %v858, %v871
    %v887 = vlaneseq
    %v888 = vshrl.u32 %v887, 7
    %v889 = vsub.s32 0, %v888
    %v890 = vrot.slane %v885, %v889
    %v891 = vmul.f32 %v886, %v890
    %v892 = vlaneseq
    %v893 = vshrl.u32 %v892, 7
    %v894 = vsub.s32 0, %v893
    %v895 = vrot.slane %v864, %v894
    %v896 = vadd.f32 %v891, %v895
    %v897 = vmax.f32 %v896, 0.0
    %s898 = sshll.u32 %s193, 4
    %899 = dma.done %s165, %s898
    %v900 = vpack.c.bf16 %v897, %v897
    %v901 = vld [vmem:[%s164] sm:$0xff]
    %v902 = vld [vmem:[%s164 + $0x8] sm:$0xff]
    %v903 = vld [vmem:[%s164 + $0x10] sm:$0xff]
    %v904 = vld [vmem:[%s164 + $0x18] sm:$0xff]
    %v905 = vld [vmem:[%s164 + $0x20] sm:$0xff]
    %v906 = vld [vmem:[%s164 + $0x28] sm:$0xff]
    %v907 = vld [vmem:[%s164 + $0x30] sm:$0xff]
    %v908 = vld [vmem:[%s164 + $0x38] sm:$0xff]
    %v909 = vld [vmem:[#allocation9 + $0x8] sm:$0x1]
    %v910 = vlaneseq
    %v911 = vshrl.u32 %v910, 7
    %v912 = vsub.s32 0, %v911
    %v913 = vrot.slane %v909, %v912
    %914 = vmatprep.subr.bf16.mxu0 0
    %915 = vmatpush1.bf16.msra.mxu0 %v901
    %916 = vmatprep.subr.bf16.mxu0 0
    %917 = vmatpush1.bf16.msra.mxu0 %v902
    %918 = vmatprep.subr.bf16.mxu0 0
    %919 = vmatpush1.bf16.msra.mxu0 %v903
    %920 = vmatprep.subr.bf16.mxu0 0
    %921 = vmatpush1.bf16.msra.mxu0 %v904
    %922 = vmatprep.subr.bf16.mxu0 0
    %923 = vmatpush1.bf16.msra.mxu0 %v905
    %924 = vmatprep.subr.bf16.mxu0 0
    %925 = vmatpush1.bf16.msra.mxu0 %v906
    %926 = vmatprep.subr.bf16.mxu0 0
    %927 = vmatpush1.bf16.msra.mxu0 %v907
    %928 = vmatprep.subr.bf16.mxu0 0
    %929 = vmatpush1.bf16.msra.mxu0 %v908
    %930 = vmatprep.subr.bf16.mxu0 0
    %931 = vmatpush1.bf16.msra.mxu0 0
    %932 = vmatprep.subr.bf16.mxu0 0
    %933 = vmatpush1.bf16.msra.mxu0 0
    %934 = vmatprep.subr.bf16.mxu0 0
    %935 = vmatpush1.bf16.msra.mxu0 0
    %936 = vmatprep.subr.bf16.mxu0 0
    %937 = vmatpush1.bf16.msra.mxu0 0
    %938 = vmatprep.subr.bf16.mxu0 0
    %939 = vmatpush1.bf16.msra.mxu0 0
    %940 = vmatprep.subr.bf16.mxu0 0
    %941 = vmatpush1.bf16.msra.mxu0 0
    %942 = vmatprep.subr.bf16.mxu0 0
    %943 = vmatpush1.bf16.msra.mxu0 0
    %944 = vmatprep.subr.bf16.mxu0 0
    %945 = vmatpush1.bf16.msra.mxu0 0
    %946 = vmatprep.mubr.bf16.mxu0 0
    %947 = vmatmul.mubr.bf16.gmra.mrb[0].mxu0 %v900
    %v948 = vpop.f32.mrb[0].mxu0
    %v949 = vadd.f32 %v913, %v948
    %v950 = vpop.f32.mrb[0].mxu0
    %v951 = vpop.f32.mrb[0].mxu0
    %v952 = vpop.f32.mrb[0].mxu0
    %953 = vdwg.mxu0
    %v954 = vld [vmem:[#allocation9 + $0x18] sm:$0x1]
    %v955 = vld [vmem:[#allocation9 + $0x19] sm:$0x1]
    %v956 = vrot.slane %v949, 4
    %v957 = vadd.f32 %v949, %v956
    %v958 = vrot.slane %v957, 2
    %v959 = vadd.f32 %v957, %v958
    %v960 = vrot.slane %v959, 1
    %v961 = vadd.f32 %v959, %v960
    %v962 = vmul.f32 %v961, %v258
    %v963 = vmul.f32 %v949, %v949
    %v964 = vrot.slane %v963, 4
    %v965 = vadd.f32 %v963, %v964
    %v966 = vrot.slane %v965, 2
    %v967 = vadd.f32 %v965, %v966
    %v968 = vrot.slane %v967, 1
    %v969 = vadd.f32 %v967, %v968
    %v970 = vmul.f32 %v969, %v258
    %v971 = vmul.f32 %v962, %v962
    %v972 = vsub.f32 %v970, %v971
    %v973 = vmax.f32 %v972, 0.0
    %v974 = vadd.f32 %v973, 1e-05
    %v975 = vrsqrt.pop %v974
    %v976 = vmul.f32 %v954, %v975
    %v977 = vsub.f32 %v949, %v962
    %v978 = vlaneseq
    %v979 = vshrl.u32 %v978, 7
    %v980 = vsub.s32 0, %v979
    %v981 = vrot.slane %v976, %v980
    %v982 = vmul.f32 %v977, %v981
    %v983 = vlaneseq
    %v984 = vshrl.u32 %v983, 7
    %v985 = vsub.s32 0, %v984
    %v986 = vrot.slane %v955, %v985
    %v987 = vadd.f32 %v982, %v986
    %v988 = vmax.f32 %v987, 0.0
    %s989 = sshll.u32 %s193, 4
    %990 = dma.done %s179, %s989
    %v991 = vpack.c.bf16 %v988, %v988
    %v992 = vld [vmem:[%s178] sm:$0xff]
    %v993 = vld [vmem:[%s178 + $0x8] sm:$0xff]
    %v994 = vld [vmem:[%s178 + $0x10] sm:$0xff]
    %v995 = vld [vmem:[%s178 + $0x18] sm:$0xff]
    %v996 = vld [vmem:[%s178 + $0x20] sm:$0xff]
    %v997 = vld [vmem:[%s178 + $0x28] sm:$0xff]
    %v998 = vld [vmem:[%s178 + $0x30] sm:$0xff]
    %v999 = vld [vmem:[%s178 + $0x38] sm:$0xff]
    %v1000 = vld [vmem:[#allocation9 + $0x9] sm:$0x1]
    %v1001 = vlaneseq
    %v1002 = vshrl.u32 %v1001, 7
    %v1003 = vsub.s32 0, %v1002
    %v1004 = vrot.slane %v1000, %v1003
    %1005 = vmatprep.subr.bf16.mxu0 0
    %1006 = vmatpush1.bf16.msra.mxu0 %v992
    %1007 = vmatprep.subr.bf16.mxu0 0
    %1008 = vmatpush1.bf16.msra.mxu0 %v993
    %1009 = vmatprep.subr.bf16.mxu0 0
    %1010 = vmatpush1.bf16.msra.mxu0 %v994
    %1011 = vmatprep.subr.bf16.mxu0 0
    %1012 = vmatpush1.bf16.msra.mxu0 %v995
    %1013 = vmatprep.subr.bf16.mxu0 0
    %1014 = vmatpush1.bf16.msra.mxu0 %v996
    %1015 = vmatprep.subr.bf16.mxu0 0
    %1016 = vmatpush1.bf16.msra.mxu0 %v997
    %1017 = vmatprep.subr.bf16.mxu0 0
    %1018 = vmatpush1.bf16.msra.mxu0 %v998
    %1019 = vmatprep.subr.bf16.mxu0 0
    %1020 = vmatpush1.bf16.msra.mxu0 %v999
    %1021 = vmatprep.subr.bf16.mxu0 0
    %1022 = vmatpush1.bf16.msra.mxu0 0
    %1023 = vmatprep.subr.bf16.mxu0 0
    %1024 = vmatpush1.bf16.msra.mxu0 0
    %1025 = vmatprep.subr.bf16.mxu0 0
    %1026 = vmatpush1.bf16.msra.mxu0 0
    %1027 = vmatprep.subr.bf16.mxu0 0
    %1028 = vmatpush1.bf16.msra.mxu0 0
    %1029 = vmatprep.subr.bf16.mxu0 0
    %1030 = vmatpush1.bf16.msra.mxu0 0
    %1031 = vmatprep.subr.bf16.mxu0 0
    %1032 = vmatpush1.bf16.msra.mxu0 0
    %1033 = vmatprep.subr.bf16.mxu0 0
    %1034 = vmatpush1.bf16.msra.mxu0 0
    %1035 = vmatprep.subr.bf16.mxu0 0
    %1036 = vmatpush1.bf16.msra.mxu0 0
    %1037 = vmatprep.mubr.bf16.mxu0 0
    %1038 = vmatmul.mubr.bf16.gmra.mrb[0].mxu0 %v991
    %v1039 = vpop.f32.mrb[0].mxu0
    %v1040 = vadd.f32 %v1004, %v1039
    %v1041 = vpop.f32.mrb[0].mxu0
    %v1042 = vpop.f32.mrb[0].mxu0
    %v1043 = vpop.f32.mrb[0].mxu0
    %1044 = vdwg.mxu0
    %v1045 = vld [vmem:[#allocation9 + $0x1a] sm:$0x1]
    %v1046 = vld [vmem:[#allocation9 + $0x1b] sm:$0x1]
    %v1047 = vrot.slane %v1040, 4
    %v1048 = vadd.f32 %v1040, %v1047
    %v1049 = vrot.slane %v1048, 2
    %v1050 = vadd.f32 %v1048, %v1049
    %v1051 = vrot.slane %v1050, 1
    %v1052 = vadd.f32 %v1050, %v1051
    %v1053 = vmul.f32 %v1052, %v258
    %v1054 = vmul.f32 %v1040, %v1040
    %v1055 = vrot.slane %v1054, 4
    %v1056 = vadd.f32 %v1054, %v1055
    %v1057 = vrot.slane %v1056, 2
    %v1058 = vadd.f32 %v1056, %v1057
    %v1059 = vrot.slane %v1058, 1
    %v1060 = vadd.f32 %v1058, %v1059
    %v1061 = vmul.f32 %v1060, %v258
    %v1062 = vmul.f32 %v1053, %v1053
    %v1063 = vsub.f32 %v1061, %v1062
    %v1064 = vmax.f32 %v1063, 0.0
    %v1065 = vadd.f32 %v1064, 1e-05
    %v1066 = vrsqrt.pop %v1065
    %v1067 = vmul.f32 %v1045, %v1066
    %v1068 = vsub.f32 %v1040, %v1053
    %v1069 = vlaneseq
    %v1070 = vshrl.u32 %v1069, 7
    %v1071 = vsub.s32 0, %v1070
    %v1072 = vrot.slane %v1067, %v1071
    %v1073 = vmul.f32 %v1068, %v1072
    %v1074 = vlaneseq
    %v1075 = vshrl.u32 %v1074, 7
    %v1076 = vsub.s32 0, %v1075
    %v1077 = vrot.slane %v1046, %v1076
    %v1078 = vadd.f32 %v1073, %v1077
    %1079 = vst [vmem:[#allocation10] sm:$0xff] %v1078
    %1080 = vst [vmem:[#allocation10 + $0x8] sm:$0xff] %v610
    // Predicated region
    $region66: #{tpu_custom_call.1} parent=1 // pred_check
      _
    $region67: #{tpu_custom_call.1} parent=1 // pred_check_branch
      %1082 = sbr.rel (0) target = $region69
    $region68: #{tpu_custom_call.1} parent=1 // pred_region
      %s1084 = ssub.s32 256, 256
      %1085 = vsyncadd [#allocation6], %s1084
      %s1087 = sshll.u32 [#allocation10], 4
      %s1088 = int_to_ptr.vmem [resolvable:$true] %s1087
      %1090 = dma.vmem_to_hbm [thread:$0]  %s1088, 256, %s4, [#allocation6]
    $region69: #{tpu_custom_call.1} parent=1 // pred_fallthru
      _
    // Predicated region
    $region70: #{tpu_custom_call.1} parent=1 // pred_check
      _
    $region71: #{tpu_custom_call.1} parent=1 // pred_check_branch
      %1092 = sbr.rel (0) target = $region73
    $region72: #{tpu_custom_call.1} parent=1 // pred_region
      %1093 = dma.done [#allocation6], 256
    $region73: #{tpu_custom_call.1} parent=1 // pred_fallthru
      _
    %1094 = vsyncpa [#allocation5], 1
    %1095 = vsyncpa [#allocation8], 1
    %1096 = vsyncpa [#allocation6], 1
  %1097 = vsyncmov [#allocation3]
  %s1098 = vpop.sfrf %1097
  %p1099 = scmp.eq.s32.totalorder %s1098, 0
  %p1100 = pneg %p1099
  %1102 = shalt.err (%p1100)
  %s1103 = scalar_lea.sflag [#allocation3], 1
  %1104 = vsyncmov %s1103
  %s1105 = vpop.sfrf %1104
  %p1106 = scmp.eq.s32.totalorder %s1105, 0
  %p1107 = pneg %p1106
  %1109 = shalt.err (%p1107)
  %s1110 = scalar_lea.sflag [#allocation3], 2
  %1111 = vsyncmov %s1110
  %s1112 = vpop.sfrf %1111
  %p1113 = scmp.eq.s32.totalorder %s1112, 0
  %p1114 = pneg %p1113
  %1116 = shalt.err (%p1114)
  %s1117 = scalar_lea.sflag [#allocation3], 3
  %1118 = vsyncmov %s1117
  %s1119 = vpop.sfrf %1118
  %p1120 = scmp.eq.s32.totalorder %s1119, 0
  %p1121 = pneg %p1120
  %1123 = shalt.err (%p1121)
  %s1124 = scalar_lea.sflag [#allocation3], 4
  %1125 = vsyncmov %s1124
  %s1126 = vpop.sfrf %1125
  %p1127 = scmp.eq.s32.totalorder %s1126, 0
  %p1128 = pneg %p1127
  %1130 = shalt.err (%p1128)
  %s1131 = scalar_lea.sflag [#allocation3], 5
  %1132 = vsyncmov %s1131
  %s1133 = vpop.sfrf %1132
  %p1134 = scmp.eq.s32.totalorder %s1133, 0
  %p1135 = pneg %p1134
  %1137 = shalt.err (%p1135)
  %s1138 = scalar_lea.sflag [#allocation3], 6
  %1139 = vsyncmov %s1138
  %s1140 = vpop.sfrf %1139
  %p1141 = scmp.eq.s32.totalorder %s1140, 0
  %p1142 = pneg %p1141
  %1144 = shalt.err (%p1142)
  %s1145 = scalar_lea.sflag [#allocation3], 7
  %1146 = vsyncmov %s1145
  %s1147 = vpop.sfrf %1146
  %p1148 = scmp.eq.s32.totalorder %s1147, 0
  %p1149 = pneg %p1148
  %1151 = shalt.err (%p1149)
  %s1152 = scalar_lea.sflag [#allocation3], 8
  %1153 = vsyncmov %s1152
  %s1154 = vpop.sfrf %1153
  %p1155 = scmp.eq.s32.totalorder %s1154, 0
  %p1156 = pneg %p1155
  %1158 = shalt.err (%p1156)
  %s1159 = scalar_lea.sflag [#allocation3], 9
  %1160 = vsyncmov %s1159
  %s1161 = vpop.sfrf %1160
  %p1162 = scmp.eq.s32.totalorder %s1161, 0
  %p1163 = pneg %p1162
  %1165 = shalt.err (%p1163)

</llo_original>
